<compile_context>
chip_gen: v7x
topology: tpu7x:2x2x1
jax: 0.10.0
libtpu: 0.0.40
codegen_flags: <defaults>
</compile_context>

<pallas_src>
import functools

import jax
import jax.numpy as jnp
from jax import lax
from jax.experimental import pallas as pl
from jax.experimental.pallas import tpu as pltpu

LAYERS = [4, 80, 80, 80, 80, 80, 80, 1]
_IN_DIM = LAYERS[0]             # 4
_HIDDEN = LAYERS[1]             # 80
_N_HIDDEN_MM = len(LAYERS) - 3  # 5 packed (80, 80) hidden weights
_N_TANH = len(LAYERS) - 2       # 6 layers followed by tanh
_OUT_DIM = LAYERS[-1]           # 1
_MAX_TILE = 8192                # VMEM guardrail (f32 intermediates scale with tile)


def _bf16_elementwise_default():
    """Use bf16 tanh / bias-add only where the VPU/EUP support bf16 (v6e/v7x)."""
    try:
        kind = jax.devices()[0].device_kind.lower()
    except Exception:
        return False
    return ("v6" in kind) or ("v7" in kind)


def _mlp_kernel(x_ref, w0_ref, wh_ref, bh_ref, wl_ref, bl_ref, out_ref, *, act_dtype):
    """Fused MLP forward, batch-on-lanes activations, bf16 MXU / f32 accumulation.

    x_ref  : (tile_n, in_dim) f32   batch rows (last dim = full array dim 4)
    w0_ref : (hidden, in_dim) bf16  first Linear weight, torch (out, in) layout
    wh_ref : (5, hidden, hidden) bf16  packed hidden Linear weights
    bh_ref : (hidden, 6) f32        packed biases for the 6 tanh layers
    wl_ref : (out_dim, hidden) bf16 final Linear weight
    bl_ref : (out_dim, 1) f32       final Linear bias
    out_ref: (out_dim, tile_n) f32  lane-dense output slab
    """
    # Layer 0 as an "NT" matmul: contract dim 1 of w0 (80,4) with dim 1 of the
    # x block (tile_n,4) -> (80, tile_n).  Avoids any wrapper-side HBM transpose.
    x = x_ref[...].astype(jnp.bfloat16)
    h = lax.dot_general(
        w0_ref[...], x,
        dimension_numbers=(((1,), (1,)), ((), ())),
        preferred_element_type=jnp.float32)                       # (80, tile_n) f32
    h = jnp.tanh((h + bh_ref[:, 0:1]).astype(act_dtype)).astype(jnp.bfloat16)

    # Hidden layers 1..5: bf16 (80, 80) @ bf16 (80, tile_n) -> f32 accumulation.
    for li in range(_N_HIDDEN_MM):
        h = jnp.dot(wh_ref[li], h, preferred_element_type=jnp.float32)
        h = jnp.tanh((h + bh_ref[:, li + 1:li + 2]).astype(act_dtype)).astype(jnp.bfloat16)

    # Final layer (no activation): (1, 80) @ (80, tile_n) -> (1, tile_n).
    out = jnp.dot(wl_ref[...], h, preferred_element_type=jnp.float32) + bl_ref[...]
    out_ref[...] = out.astype(out_ref.dtype)


def init_params(key, layers=LAYERS):
    """torch.nn.Linear-style init: W is (out, in), b is (out,), U(-1/sqrt(fan_in), +)."""
    params = []
    for i in range(len(layers) - 1):
        fan_in, fan_out = layers[i], layers[i + 1]
        key, kw, kb = jax.random.split(key, 3)
        bound = 1.0 / (fan_in ** 0.5)
        w = jax.random.uniform(kw, (fan_out, fan_in), jnp.float32, -bound, bound)
        b = jax.random.uniform(kb, (fan_out,), jnp.float32, -bound, bound)
        params.append((w, b))
    return params


def _pack_params(params):
    """Pack the 7 (W, b) pairs into 5 arrays; weights go to bf16 (MXU operands)."""
    w0 = params[0][0].astype(jnp.bfloat16)                                     # (80, 4)
    wh = jnp.stack([params[i][0] for i in range(1, 1 + _N_HIDDEN_MM)]
                   ).astype(jnp.bfloat16)                                      # (5, 80, 80)
    bh = jnp.stack([params[i][1] for i in range(_N_TANH)], axis=1)             # (80, 6) f32
    wl = params[-1][0].astype(jnp.bfloat16)                                    # (1, 80)
    bl = params[-1][1].reshape(_OUT_DIM, 1)                                    # (1, 1)  f32
    return w0, wh, bh, wl, bl


def _round_up(x, m):
    return ((x + m - 1) // m) * m


def _tile_and_grid(n, tile_n):
    """Pick a 128-multiple batch tile; keep the grid even/>=2 when possible
    so both v7x TensorCores get work (harmless extra step on 1-TC chips)."""
    n128 = _round_up(max(n, 1), 128)
    tile_n = min(max(int(tile_n), 128), _MAX_TILE)
    eff_tile = max(128, min(_round_up(tile_n, 128), n128))
    num_tiles = -(-n128 // eff_tile)
    if n128 > 128:
        num_tiles = max(2, num_tiles + (num_tiles % 2))
        eff_tile = max(128, _round_up(-(-n128 // num_tiles), 128))
    n_pad = eff_tile * num_tiles
    return eff_tile, num_tiles, n_pad


@functools.partial(jax.jit, static_argnames=("tile_n", "bf16_act"))
def dnn1_forward(x, params, tile_n=2048, bf16_act=None):
    """x: (N, 4) float32 -> (N, 1) float32.  Any N (padded internally).

    tile_n: batch columns (lanes) per grid step; sweep 2048..8192 for large
    collocation batches (whole-model VMEM footprint stays < a few MiB).
    bf16_act: bf16 tanh/bias-add (v6e/v7x) vs. f32 (v5e); auto-detected if None.
    """
    n, in_dim = x.shape
    assert in_dim == _IN_DIM, (in_dim, _IN_DIM)
    if bf16_act is None:
        bf16_act = _bf16_elementwise_default()
    act_dtype = jnp.bfloat16 if bf16_act else jnp.float32

    eff_tile, num_tiles, n_pad = _tile_and_grid(n, tile_n)
    # Padded tail rows are computed (tanh chain over zero inputs) and sliced
    # off below -- do NOT reuse the padded slab.
    x_pad = jnp.pad(x, ((0, n_pad - n), (0, 0))) if n_pad != n else x

    w0, wh, bh, wl, bl = _pack_params(params)

    const2 = lambda i: (0, 0)
    const3 = lambda i: (0, 0, 0)
    in_specs = [
        pl.BlockSpec((eff_tile, _IN_DIM), lambda i: (i, 0)),  # x tile (rows, full 4-dim)
        pl.BlockSpec(w0.shape, const2),                       # parameters: full-array,
        pl.BlockSpec(wh.shape, const3),                       # constant block index ->
        pl.BlockSpec(bh.shape, const2),                       # resident in VMEM, not
        pl.BlockSpec(wl.shape, const2),                       # re-fetched per step
        pl.BlockSpec(bl.shape, const2),
    ]
    out_spec = pl.BlockSpec((_OUT_DIM, eff_tile), lambda i: (0, i))  # lane-dense output

    mm_flops = 2 * n_pad * (_IN_DIM * _HIDDEN
                            + _N_HIDDEN_MM * _HIDDEN * _HIDDEN
                            + _HIDDEN * _OUT_DIM)
    ew_flops = 2 * n_pad * _N_TANH * _HIDDEN
    weight_bytes = int(w0.size * 2 + wh.size * 2 + wl.size * 2 + bh.size * 4 + bl.size * 4)

    out_t = pl.pallas_call(
        functools.partial(_mlp_kernel, act_dtype=act_dtype),
        out_shape=jax.ShapeDtypeStruct((_OUT_DIM, n_pad), jnp.float32),
        grid_spec=pltpu.PrefetchScalarGridSpec(
            num_scalar_prefetch=0,
            grid=(num_tiles,),
            in_specs=in_specs,
            out_specs=out_spec,
        ),
        compiler_params=pltpu.CompilerParams(
            dimension_semantics=("parallel",),   # batch tiles shard across TCs (v7x)
        ),
        cost_estimate=pl.CostEstimate(
            flops=mm_flops + ew_flops,
            transcendentals=_N_TANH * _HIDDEN * n_pad,
            bytes_accessed=n_pad * (_IN_DIM * 4 + _OUT_DIM * 4) + weight_bytes),
    )(x_pad, w0, wh, bh, wl, bl)

    # (1, n_pad) is contiguous, identical memory to (n_pad, 1): free reshape,
    # then drop the padded tail rows.
    return out_t.reshape(n_pad, _OUT_DIM)[:n]


def dnn1_reference_f32(x, params):
    """Pure f32 reference (matches the PyTorch module semantics)."""
    h = x
    for i, (w, b) in enumerate(params):
        h = h @ w.T + b
        if i < len(params) - 1:
            h = jnp.tanh(h)
    return h


def dnn1_reference_matched(x, params, bf16_act):
    """Reference mirroring the kernel's dtype strategy (bf16 operands, f32 acc)."""
    act_dtype = jnp.bfloat16 if bf16_act else jnp.float32
    h = x.astype(jnp.bfloat16)
    out = None
    for i, (w, b) in enumerate(params):
        w = w.astype(jnp.bfloat16)
        z = jnp.dot(h, w.T, preferred_element_type=jnp.float32) + b
        if i < len(params) - 1:
            h = jnp.tanh(z.astype(act_dtype)).astype(jnp.bfloat16)
        else:
            out = z
    return out


if __name__ == "__main__":
    key = jax.random.PRNGKey(0)
    key, kx = jax.random.split(key)

    # Small PINN-style collocation batch; N deliberately NOT a multiple of the
    # tile so the ragged-padding / even-grid path is exercised.
    N = 600
    x = jax.random.uniform(kx, (N, _IN_DIM), jnp.float32, -1.0, 1.0)
    params = init_params(jax.random.PRNGKey(0))

    bf16_act = _bf16_elementwise_default()
    out = dnn1_forward(x, params, tile_n=2048, bf16_act=bf16_act)
    out = jax.block_until_ready(out)
    assert out.shape == (N, _OUT_DIM), out.shape

    ref_m = dnn1_reference_matched(x, params, bf16_act)
    ref_f32 = dnn1_reference_f32(x, params)
    err_m = float(jnp.max(jnp.abs(out - ref_m)))
    err_f32 = float(jnp.max(jnp.abs(out - ref_f32)))
    # bf16 MXU operands => compare tightly vs. a dtype-matched reference and
    # loosely vs. the pure-f32 reference.
    assert jnp.allclose(out, ref_m, atol=2.5e-2, rtol=2.5e-2), (err_m, err_f32)
    assert jnp.allclose(out, ref_f32, atol=7.5e-2, rtol=7.5e-2), (err_m, err_f32)

    print("KERNEL_OK")
</pallas_src>

<mosaic_0001>
module attributes {stable_mosaic.version = 11 : i64} {
  func.func @_mlp_kernel(%arg0: i32, %arg1: memref<384x4xf32, #tpu.memory_space<vmem>>, %arg2: memref<80x4xbf16, #tpu.memory_space<vmem>>, %arg3: memref<5x80x80xbf16, #tpu.memory_space<vmem>>, %arg4: memref<80x6xf32, #tpu.memory_space<vmem>>, %arg5: memref<1x80xbf16, #tpu.memory_space<vmem>>, %arg6: memref<1x1xf32, #tpu.memory_space<vmem>>, %arg7: memref<1x384xf32, #tpu.memory_space<vmem>>) attributes {dimension_semantics = [#tpu.dimension_semantics<parallel>], iteration_bounds = array<i64: 2>, scalar_prefetch = 0 : i64, scratch_operands = 0 : i64, tpu.core_type = #tpu.core_type<tc>, window_params = [{transform_indices = @transform_0, window_bounds = array<i64: 384, 4>}, {pipeline_mode = #tpu.pipeline_mode<synchronous>, transform_indices = @transform_1, window_bounds = array<i64: 80, 4>}, {pipeline_mode = #tpu.pipeline_mode<synchronous>, transform_indices = @transform_2, window_bounds = array<i64: 5, 80, 80>}, {pipeline_mode = #tpu.pipeline_mode<synchronous>, transform_indices = @transform_3, window_bounds = array<i64: 80, 6>}, {pipeline_mode = #tpu.pipeline_mode<synchronous>, transform_indices = @transform_4, window_bounds = array<i64: 1, 80>}, {pipeline_mode = #tpu.pipeline_mode<synchronous>, transform_indices = @transform_5, window_bounds = array<i64: 1, 1>}, {transform_indices = @transform_6, window_bounds = array<i64: 1, 384>}]} {
    %c0 = arith.constant 0 : index
    %c0_0 = arith.constant 0 : index
    %0 = vector.load %arg1[%c0, %c0_0] : memref<384x4xf32, #tpu.memory_space<vmem>>, vector<384x4xf32>
    %1 = arith.truncf %0 : vector<384x4xf32> to vector<384x4xbf16>
    %c0_1 = arith.constant 0 : index
    %c0_2 = arith.constant 0 : index
    %2 = vector.load %arg2[%c0_1, %c0_2] : memref<80x4xbf16, #tpu.memory_space<vmem>>, vector<80x4xbf16>
    %cst = arith.constant dense<0.000000e+00> : vector<80x384xf32>
    %3 = tpu.matmul %2, %1, %cst {dimension_numbers = #tpu.dot_dimension_numbers<[1], [1], [0], [0], [0, 0, 1, 0], [], []>} : vector<80x4xbf16>, vector<384x4xbf16>, vector<80x384xf32> -> vector<80x384xf32>
    %c0_3 = arith.constant 0 : index
    %c0_4 = arith.constant 0 : index
    %4 = vector.load %arg4[%c0_3, %c0_4] : memref<80x6xf32, #tpu.memory_space<vmem>>, vector<80x1xf32>
    %5 = vector.broadcast %4 : vector<80x1xf32> to vector<80x384xf32>
    %6 = arith.addf %3, %5 : vector<80x384xf32>
    %7 = math.tanh %6 : vector<80x384xf32>
    %8 = arith.truncf %7 : vector<80x384xf32> to vector<80x384xbf16>
    %c0_5 = arith.constant 0 : index
    %c0_6 = arith.constant 0 : index
    %c0_7 = arith.constant 0 : index
    %9 = vector.load %arg3[%c0_5, %c0_6, %c0_7] : memref<5x80x80xbf16, #tpu.memory_space<vmem>>, vector<1x80x80xbf16>
    %10 = vector.shape_cast %9 : vector<1x80x80xbf16> to vector<80x80xbf16>
    %cst_8 = arith.constant dense<0.000000e+00> : vector<80x384xf32>
    %11 = tpu.matmul %10, %8, %cst_8 {dimension_numbers = #tpu.dot_dimension_numbers<[1], [0], [0], [1], [0, 0, 1, 1], [], []>} : vector<80x80xbf16>, vector<80x384xbf16>, vector<80x384xf32> -> vector<80x384xf32>
    %c0_9 = arith.constant 0 : index
    %c1 = arith.constant 1 : index
    %12 = vector.load %arg4[%c0_9, %c1] : memref<80x6xf32, #tpu.memory_space<vmem>>, vector<80x1xf32>
    %13 = vector.broadcast %12 : vector<80x1xf32> to vector<80x384xf32>
    %14 = arith.addf %11, %13 : vector<80x384xf32>
    %15 = math.tanh %14 : vector<80x384xf32>
    %16 = arith.truncf %15 : vector<80x384xf32> to vector<80x384xbf16>
    %c1_10 = arith.constant 1 : index
    %c0_11 = arith.constant 0 : index
    %c0_12 = arith.constant 0 : index
    %17 = vector.load %arg3[%c1_10, %c0_11, %c0_12] : memref<5x80x80xbf16, #tpu.memory_space<vmem>>, vector<1x80x80xbf16>
    %18 = vector.shape_cast %17 : vector<1x80x80xbf16> to vector<80x80xbf16>
    %cst_13 = arith.constant dense<0.000000e+00> : vector<80x384xf32>
    %19 = tpu.matmul %18, %16, %cst_13 {dimension_numbers = #tpu.dot_dimension_numbers<[1], [0], [0], [1], [0, 0, 1, 1], [], []>} : vector<80x80xbf16>, vector<80x384xbf16>, vector<80x384xf32> -> vector<80x384xf32>
    %c0_14 = arith.constant 0 : index
    %c2 = arith.constant 2 : index
    %20 = vector.load %arg4[%c0_14, %c2] : memref<80x6xf32, #tpu.memory_space<vmem>>, vector<80x1xf32>
    %21 = vector.broadcast %20 : vector<80x1xf32> to vector<80x384xf32>
    %22 = arith.addf %19, %21 : vector<80x384xf32>
    %23 = math.tanh %22 : vector<80x384xf32>
    %24 = arith.truncf %23 : vector<80x384xf32> to vector<80x384xbf16>
    %c2_15 = arith.constant 2 : index
    %c0_16 = arith.constant 0 : index
    %c0_17 = arith.constant 0 : index
    %25 = vector.load %arg3[%c2_15, %c0_16, %c0_17] : memref<5x80x80xbf16, #tpu.memory_space<vmem>>, vector<1x80x80xbf16>
    %26 = vector.shape_cast %25 : vector<1x80x80xbf16> to vector<80x80xbf16>
    %cst_18 = arith.constant dense<0.000000e+00> : vector<80x384xf32>
    %27 = tpu.matmul %26, %24, %cst_18 {dimension_numbers = #tpu.dot_dimension_numbers<[1], [0], [0], [1], [0, 0, 1, 1], [], []>} : vector<80x80xbf16>, vector<80x384xbf16>, vector<80x384xf32> -> vector<80x384xf32>
    %c0_19 = arith.constant 0 : index
    %c3 = arith.constant 3 : index
    %28 = vector.load %arg4[%c0_19, %c3] : memref<80x6xf32, #tpu.memory_space<vmem>>, vector<80x1xf32>
    %29 = vector.broadcast %28 : vector<80x1xf32> to vector<80x384xf32>
    %30 = arith.addf %27, %29 : vector<80x384xf32>
    %31 = math.tanh %30 : vector<80x384xf32>
    %32 = arith.truncf %31 : vector<80x384xf32> to vector<80x384xbf16>
    %c3_20 = arith.constant 3 : index
    %c0_21 = arith.constant 0 : index
    %c0_22 = arith.constant 0 : index
    %33 = vector.load %arg3[%c3_20, %c0_21, %c0_22] : memref<5x80x80xbf16, #tpu.memory_space<vmem>>, vector<1x80x80xbf16>
    %34 = vector.shape_cast %33 : vector<1x80x80xbf16> to vector<80x80xbf16>
    %cst_23 = arith.constant dense<0.000000e+00> : vector<80x384xf32>
    %35 = tpu.matmul %34, %32, %cst_23 {dimension_numbers = #tpu.dot_dimension_numbers<[1], [0], [0], [1], [0, 0, 1, 1], [], []>} : vector<80x80xbf16>, vector<80x384xbf16>, vector<80x384xf32> -> vector<80x384xf32>
    %c0_24 = arith.constant 0 : index
    %c4 = arith.constant 4 : index
    %36 = vector.load %arg4[%c0_24, %c4] : memref<80x6xf32, #tpu.memory_space<vmem>>, vector<80x1xf32>
    %37 = vector.broadcast %36 : vector<80x1xf32> to vector<80x384xf32>
    %38 = arith.addf %35, %37 : vector<80x384xf32>
    %39 = math.tanh %38 : vector<80x384xf32>
    %40 = arith.truncf %39 : vector<80x384xf32> to vector<80x384xbf16>
    %c4_25 = arith.constant 4 : index
    %c0_26 = arith.constant 0 : index
    %c0_27 = arith.constant 0 : index
    %41 = vector.load %arg3[%c4_25, %c0_26, %c0_27] : memref<5x80x80xbf16, #tpu.memory_space<vmem>>, vector<1x80x80xbf16>
    %42 = vector.shape_cast %41 : vector<1x80x80xbf16> to vector<80x80xbf16>
    %cst_28 = arith.constant dense<0.000000e+00> : vector<80x384xf32>
    %43 = tpu.matmul %42, %40, %cst_28 {dimension_numbers = #tpu.dot_dimension_numbers<[1], [0], [0], [1], [0, 0, 1, 1], [], []>} : vector<80x80xbf16>, vector<80x384xbf16>, vector<80x384xf32> -> vector<80x384xf32>
    %c0_29 = arith.constant 0 : index
    %c5 = arith.constant 5 : index
    %44 = vector.load %arg4[%c0_29, %c5] : memref<80x6xf32, #tpu.memory_space<vmem>>, vector<80x1xf32>
    %45 = vector.broadcast %44 : vector<80x1xf32> to vector<80x384xf32>
    %46 = arith.addf %43, %45 : vector<80x384xf32>
    %47 = math.tanh %46 : vector<80x384xf32>
    %48 = arith.truncf %47 : vector<80x384xf32> to vector<80x384xbf16>
    %c0_30 = arith.constant 0 : index
    %c0_31 = arith.constant 0 : index
    %49 = vector.load %arg5[%c0_30, %c0_31] : memref<1x80xbf16, #tpu.memory_space<vmem>>, vector<1x80xbf16>
    %cst_32 = arith.constant dense<0.000000e+00> : vector<1x384xf32>
    %50 = tpu.matmul %49, %48, %cst_32 {dimension_numbers = #tpu.dot_dimension_numbers<[1], [0], [0], [1], [0, 0, 1, 1], [], []>} : vector<1x80xbf16>, vector<80x384xbf16>, vector<1x384xf32> -> vector<1x384xf32>
    %c0_33 = arith.constant 0 : index
    %c0_34 = arith.constant 0 : index
    %51 = vector.load %arg6[%c0_33, %c0_34] : memref<1x1xf32, #tpu.memory_space<vmem>>, vector<1x1xf32>
    %52 = vector.broadcast %51 : vector<1x1xf32> to vector<1x384xf32>
    %53 = arith.addf %50, %52 : vector<1x384xf32>
    %c0_35 = arith.constant 0 : index
    %c0_36 = arith.constant 0 : index
    %54 = vector.load %arg7[%c0_35, %c0_36] : memref<1x384xf32, #tpu.memory_space<vmem>>, vector<1x384xf32>
    tpu.vector_store %arg7[%c0_35, %c0_36], %53 {strides = array<i32>} : memref<1x384xf32, #tpu.memory_space<vmem>>, vector<1x384xf32>,
    return
  }
  func.func @transform_0(%arg0: i32) -> (i32, i32) {
    %c0_i32 = arith.constant 0 : i32
    %c0_i32_0 = arith.constant 0 : i32
    return %arg0, %c0_i32 : i32, i32
  }
  func.func @transform_1(%arg0: i32) -> (i32, i32) {
    %c0_i32 = arith.constant 0 : i32
    %c0_i32_0 = arith.constant 0 : i32
    %c0_i32_1 = arith.constant 0 : i32
    return %c0_i32, %c0_i32_0 : i32, i32
  }
  func.func @transform_2(%arg0: i32) -> (i32, i32, i32) {
    %c0_i32 = arith.constant 0 : i32
    %c0_i32_0 = arith.constant 0 : i32
    %c0_i32_1 = arith.constant 0 : i32
    %c0_i32_2 = arith.constant 0 : i32
    return %c0_i32, %c0_i32_0, %c0_i32_1 : i32, i32, i32
  }
  func.func @transform_3(%arg0: i32) -> (i32, i32) {
    %c0_i32 = arith.constant 0 : i32
    %c0_i32_0 = arith.constant 0 : i32
    %c0_i32_1 = arith.constant 0 : i32
    return %c0_i32, %c0_i32_0 : i32, i32
  }
  func.func @transform_4(%arg0: i32) -> (i32, i32) {
    %c0_i32 = arith.constant 0 : i32
    %c0_i32_0 = arith.constant 0 : i32
    %c0_i32_1 = arith.constant 0 : i32
    return %c0_i32, %c0_i32_0 : i32, i32
  }
  func.func @transform_5(%arg0: i32) -> (i32, i32) {
    %c0_i32 = arith.constant 0 : i32
    %c0_i32_0 = arith.constant 0 : i32
    %c0_i32_1 = arith.constant 0 : i32
    return %c0_i32, %c0_i32_0 : i32, i32
  }
  func.func @transform_6(%arg0: i32) -> (i32, i32) {
    %c0_i32 = arith.constant 0 : i32
    %c0_i32_0 = arith.constant 0 : i32
    return %c0_i32, %arg0 : i32, i32
  }
}

</mosaic_0001>

<llo_original>
// kernel: dnn1_forward.1
$region0: #{dnn1_forward.1}
  #allocation0 [shape = 'u32[]', space=smem, size = 0x4, offset = 0x4, fixed_abs, tag = 'smem constant byte address 0x4 - core index']
  #allocation1 [shape = 'u32[144,128]{1,0:T(1,128)}', space=vmem, size = 0x12000, scoped, tag = 'internal scratch']
  #allocation2 [shape = 'f32[1,1]{1,0:T(1,128)S(1)}', space=vmem, size = 0x200, scoped, tag = 'scoped memory for dnn1_forward.1']
  %s0 = inlined_call_operand.vmem [shape: f32[768,4], index: 0, kind: input, shape index: {}]
  %s1 = inlined_call_operand.vmem [shape: bf16[80,4], index: 1, kind: input, shape index: {}]
  %s2 = inlined_call_operand.vmem [shape: bf16[5,80,80], index: 2, kind: input, shape index: {}]
  %s3 = inlined_call_operand.vmem [shape: f32[80,6], index: 3, kind: input, shape index: {}]
  %s4 = inlined_call_operand.vmem [shape: bf16[1,80], index: 4, kind: input, shape index: {}]
  %s5 = inlined_call_operand.<no memory space> [shape: f32[1,1], index: 5, kind: input, shape index: {}]
  %s6 = inlined_call_operand.vmem [shape: f32[1,768], index: 6, kind: output, shape index: {}]
  %s7 = sld [smem:[#allocation0]]
  $region57: #{dnn1_forward.1} parent=0
    _
  %s9 = ssub.s32 1, %s7
  %s10 = scalar_select 0, %s9, %s7
  %v11 = vstv %s5
  %12 = vst [vmem:[#allocation2] sm:$0x1] %v11
  loop: start=0, step=1, limit=4
  $region2: #{dnn1_forward.1} parent=0 // loop_pre_header
    _
  $region3: #{dnn1_forward.1} parent=0 // loop_header
    %s14 = sphi 0, %s18
    %p15 = scmp.ge.s32.totalorder %s14, 4
    %s24 = sphi 0, %s26
    %s27 = sphi 0, %s24
    %s28 = sphi 0, %s27
    %s44 = sphi 0, %s28
    %s48 = sphi 0, %s48
    %s50 = sphi 0, %s48
    %s51 = sphi 0, %s50
    %s65 = sphi 0, %s51
    %s69 = sphi 0, %s69
    %s71 = sphi 0, %s69
    %s72 = sphi 0, %s71
    %s86 = sphi 0, %s72
    %s90 = sphi 0, %s90
    %s92 = sphi 0, %s90
    %s93 = sphi 0, %s92
    %s107 = sphi 0, %s93
    %s111 = sphi 0, %s111
    %s113 = sphi 0, %s111
    %s114 = sphi 0, %s113
    %s128 = sphi 0, %s114
    %s132 = sphi 0, %s132
    %s134 = sphi 0, %s132
    %s135 = sphi 0, %s134
    %s149 = sphi 0, %s135
    %s155 = sphi 0, %s157
    %s158 = sphi 0, %s155
    %s159 = sphi 0, %s158
    %s175 = sphi 0, %s159
  $region4: #{dnn1_forward.1} parent=0 // loop_header_branch
    %17 = sbr.rel (%p15) target = $region8
  $region5: #{dnn1_forward.1} parent=0 // loop_body
    %s19 = ssub.s32 %s14, 1
    %s20 = ssub.s32 %s14, 2
    %s21 = sadd.s32 %s14, 1
    %s22 = ssub.s32 %s14, %s21
    %p23 = scmp.eq.s32.totalorder %s22, 0
    %s25 = sadd.s32 %s24, 1
    %s26 = scalar_select %p23, %s24, %s25
    %p29 = pneg %p23
    %p30 = scmp.eq.s32.totalorder %s14, 1
    %p31 = por %p29, %p30
    %p32 = scmp.ne.s32.totalorder %s24, %s27
    %p33 = scmp.eq.s32.totalorder %s14, 0
    %p34 = por %p32, %p33
    %p35 = scmp.ne.s32.totalorder %s24, %s27
    %p36 = scmp.eq.s32.totalorder %s19, 1
    %p37 = por %p35, %p36
    %p38 = scmp.ne.s32.totalorder %s27, %s28
    %p39 = scmp.eq.s32.totalorder %s19, 0
    %p40 = por %p38, %p39
    %p41 = scmp.ne.s32.totalorder %s27, %s28
    %p42 = scmp.eq.s32.totalorder %s20, 1
    %p43 = por %p41, %p42
    %p45 = scmp.ne.s32.totalorder %s28, %s44
    %p46 = scmp.eq.s32.totalorder %s20, 0
    %p47 = por %p45, %p46
    %s49 = sadd.s32 %s48, 1
    %p52 = scmp.eq.s32.totalorder %s14, 1
    %p53 = scmp.ne.s32.totalorder %s48, %s50
    %p54 = scmp.eq.s32.totalorder %s14, 0
    %p55 = por %p53, %p54
    %p56 = scmp.ne.s32.totalorder %s48, %s50
    %p57 = scmp.eq.s32.totalorder %s19, 1
    %p58 = por %p56, %p57
    %p59 = scmp.ne.s32.totalorder %s50, %s51
    %p60 = scmp.eq.s32.totalorder %s19, 0
    %p61 = por %p59, %p60
    %p62 = scmp.ne.s32.totalorder %s50, %s51
    %p63 = scmp.eq.s32.totalorder %s20, 1
    %p64 = por %p62, %p63
    %p66 = scmp.ne.s32.totalorder %s51, %s65
    %p67 = scmp.eq.s32.totalorder %s20, 0
    %p68 = por %p66, %p67
    %s70 = sadd.s32 %s69, 1
    %p73 = scmp.eq.s32.totalorder %s14, 1
    %p74 = scmp.ne.s32.totalorder %s69, %s71
    %p75 = scmp.eq.s32.totalorder %s14, 0
    %p76 = por %p74, %p75
    %p77 = scmp.ne.s32.totalorder %s69, %s71
    %p78 = scmp.eq.s32.totalorder %s19, 1
    %p79 = por %p77, %p78
    %p80 = scmp.ne.s32.totalorder %s71, %s72
    %p81 = scmp.eq.s32.totalorder %s19, 0
    %p82 = por %p80, %p81
    %p83 = scmp.ne.s32.totalorder %s71, %s72
    %p84 = scmp.eq.s32.totalorder %s20, 1
    %p85 = por %p83, %p84
    %p87 = scmp.ne.s32.totalorder %s72, %s86
    %p88 = scmp.eq.s32.totalorder %s20, 0
    %p89 = por %p87, %p88
    %s91 = sadd.s32 %s90, 1
    %p94 = scmp.eq.s32.totalorder %s14, 1
    %p95 = scmp.ne.s32.totalorder %s90, %s92
    %p96 = scmp.eq.s32.totalorder %s14, 0
    %p97 = por %p95, %p96
    %p98 = scmp.ne.s32.totalorder %s90, %s92
    %p99 = scmp.eq.s32.totalorder %s19, 1
    %p100 = por %p98, %p99
    %p101 = scmp.ne.s32.totalorder %s92, %s93
    %p102 = scmp.eq.s32.totalorder %s19, 0
    %p103 = por %p101, %p102
    %p104 = scmp.ne.s32.totalorder %s92, %s93
    %p105 = scmp.eq.s32.totalorder %s20, 1
    %p106 = por %p104, %p105
    %p108 = scmp.ne.s32.totalorder %s93, %s107
    %p109 = scmp.eq.s32.totalorder %s20, 0
    %p110 = por %p108, %p109
    %s112 = sadd.s32 %s111, 1
    %p115 = scmp.eq.s32.totalorder %s14, 1
    %p116 = scmp.ne.s32.totalorder %s111, %s113
    %p117 = scmp.eq.s32.totalorder %s14, 0
    %p118 = por %p116, %p117
    %p119 = scmp.ne.s32.totalorder %s111, %s113
    %p120 = scmp.eq.s32.totalorder %s19, 1
    %p121 = por %p119, %p120
    %p122 = scmp.ne.s32.totalorder %s113, %s114
    %p123 = scmp.eq.s32.totalorder %s19, 0
    %p124 = por %p122, %p123
    %p125 = scmp.ne.s32.totalorder %s113, %s114
    %p126 = scmp.eq.s32.totalorder %s20, 1
    %p127 = por %p125, %p126
    %p129 = scmp.ne.s32.totalorder %s114, %s128
    %p130 = scmp.eq.s32.totalorder %s20, 0
    %p131 = por %p129, %p130
    %s133 = sadd.s32 %s132, 1
    %p136 = scmp.eq.s32.totalorder %s14, 1
    %p137 = scmp.ne.s32.totalorder %s132, %s134
    %p138 = scmp.eq.s32.totalorder %s14, 0
    %p139 = por %p137, %p138
    %p140 = scmp.ne.s32.totalorder %s132, %s134
    %p141 = scmp.eq.s32.totalorder %s19, 1
    %p142 = por %p140, %p141
    %p143 = scmp.ne.s32.totalorder %s134, %s135
    %p144 = scmp.eq.s32.totalorder %s19, 0
    %p145 = por %p143, %p144
    %p146 = scmp.ne.s32.totalorder %s134, %s135
    %p147 = scmp.eq.s32.totalorder %s20, 1
    %p148 = por %p146, %p147
    %p150 = scmp.ne.s32.totalorder %s135, %s149
    %p151 = scmp.eq.s32.totalorder %s20, 0
    %p152 = por %p150, %p151
    %s153 = ssub.s32 %s14, %s21
    %p154 = scmp.eq.s32.totalorder %s153, 0
    %s156 = sadd.s32 %s155, 1
    %s157 = scalar_select %p154, %s155, %s156
    %p160 = pneg %p154
    %p161 = scmp.eq.s32.totalorder %s14, 1
    %p162 = por %p160, %p161
    %p163 = scmp.ne.s32.totalorder %s155, %s158
    %p164 = scmp.eq.s32.totalorder %s14, 0
    %p165 = por %p163, %p164
    %p166 = scmp.ne.s32.totalorder %s155, %s158
    %p167 = scmp.eq.s32.totalorder %s19, 1
    %p168 = por %p166, %p167
    %p169 = scmp.ne.s32.totalorder %s158, %s159
    %p170 = scmp.eq.s32.totalorder %s19, 0
    %p171 = por %p169, %p170
    %p172 = scmp.ne.s32.totalorder %s158, %s159
    %p173 = scmp.eq.s32.totalorder %s20, 1
    %p174 = por %p172, %p173
    %p176 = scmp.ne.s32.totalorder %s159, %s175
    %p177 = scmp.eq.s32.totalorder %s20, 0
    %p178 = por %p176, %p177
    %p179 = scmp.le.s32.totalorder 1, %s14
    %p180 = scmp.lt.s32.totalorder %s14, 3
    %p181 = pnand %p179, %p180
    %p182 = pneg %p181
    // Predicated region
    $region9: #{dnn1_forward.1} parent=5 // pred_check
      _
    $region10: #{dnn1_forward.1} parent=5 // pred_check_branch
      %184 = sbr.rel (%p181) target = $region12
    $region11: #{dnn1_forward.1} parent=5 // pred_region
      %s185 = ssub.s32 %s14, 1
      // Predicated region
      $region13: #{dnn1_forward.1} parent=11 // pred_check
        %p186 = pneg %p61
      $region14: #{dnn1_forward.1} parent=11 // pred_check_branch
        %188 = sbr.rel (%p186) target = $region16
      $region15: #{dnn1_forward.1} parent=11 // pred_region
        _
      $region16: #{dnn1_forward.1} parent=11 // pred_fallthru
        _
      // Predicated region
      $region17: #{dnn1_forward.1} parent=11 // pred_check
        %p189 = pneg %p82
      $region18: #{dnn1_forward.1} parent=11 // pred_check_branch
        %191 = sbr.rel (%p189) target = $region20
      $region19: #{dnn1_forward.1} parent=11 // pred_region
        _
      $region20: #{dnn1_forward.1} parent=11 // pred_fallthru
        _
      // Predicated region
      $region21: #{dnn1_forward.1} parent=11 // pred_check
        %p192 = pneg %p103
      $region22: #{dnn1_forward.1} parent=11 // pred_check_branch
        %194 = sbr.rel (%p192) target = $region24
      $region23: #{dnn1_forward.1} parent=11 // pred_region
        _
      $region24: #{dnn1_forward.1} parent=11 // pred_fallthru
        _
      // Predicated region
      $region25: #{dnn1_forward.1} parent=11 // pred_check
        %p195 = pneg %p124
      $region26: #{dnn1_forward.1} parent=11 // pred_check_branch
        %197 = sbr.rel (%p195) target = $region28
      $region27: #{dnn1_forward.1} parent=11 // pred_region
        _
      $region28: #{dnn1_forward.1} parent=11 // pred_fallthru
        _
      // Predicated region
      $region29: #{dnn1_forward.1} parent=11 // pred_check
        %p198 = pneg %p145
      $region30: #{dnn1_forward.1} parent=11 // pred_check_branch
        %200 = sbr.rel (%p198) target = $region32
      $region31: #{dnn1_forward.1} parent=11 // pred_region
        _
      $region32: #{dnn1_forward.1} parent=11 // pred_fallthru
        _
    $region12: #{dnn1_forward.1} parent=5 // pred_fallthru
      _
    %p201 = scmp.lt.s32.totalorder %s14, 2
    // Predicated region
    $region33: #{dnn1_forward.1} parent=5 // pred_check
      %p202 = pneg %p201
    $region34: #{dnn1_forward.1} parent=5 // pred_check_branch
      %204 = sbr.rel (%p202) target = $region36
    $region35: #{dnn1_forward.1} parent=5 // pred_region
      // Predicated region
      $region37: #{dnn1_forward.1} parent=35 // pred_check
        %p205 = pneg %p34
      $region38: #{dnn1_forward.1} parent=35 // pred_check_branch
        %207 = sbr.rel (%p205) target = $region40
      $region39: #{dnn1_forward.1} parent=35 // pred_region
        %s208 = smul.u32 48, %s14
        %p209 = scmp.lt.s32.totalorder %s208, 95
        %s210 = scalar_select %p209, %s208, 95
        %s211 = smul.addr %s210, 8
        %s212 = scalar_lea.vmem %s0, %s211
        %s213 = smul.u32 48, %s14
      $region40: #{dnn1_forward.1} parent=35 // pred_fallthru
        _
    $region36: #{dnn1_forward.1} parent=5 // pred_fallthru
      _
    %p214 = scmp.le.s32.totalorder 1, %s14
    %p215 = scmp.lt.s32.totalorder %s14, 3
    %p216 = pnand %p214, %p215
    %p217 = pneg %p216
    // Predicated region
    $region41: #{dnn1_forward.1} parent=5 // pred_check
      _
    $region42: #{dnn1_forward.1} parent=5 // pred_check_branch
      %219 = sbr.rel (%p216) target = $region44
    $region43: #{dnn1_forward.1} parent=5 // pred_region
      %s220 = ssub.s32 %s14, 1
      %s221 = smul.u32 48, %s19
      %p222 = scmp.lt.s32.totalorder %s221, 95
      %s223 = scalar_select %p222, %s221, 95
      %s224 = smul.addr %s223, 8
      %s225 = scalar_lea.vmem %s0, %s224
      %p226 = pneg %p40
      %p227 = pneg %p37
      %p228 = pneg %p61
      %p229 = pneg %p58
      %p230 = pneg %p82
      %p231 = pneg %p79
      %p232 = pneg %p103
      %p233 = pneg %p100
      %p234 = pneg %p124
      %p235 = pneg %p121
      %p236 = pneg %p145
      %p237 = pneg %p142
      %p238 = pneg %p171
      %p239 = pneg %p168
      %s240 = smul.u32 3, %s19
      %p241 = scmp.lt.s32.totalorder %s240, 5
      %s242 = scalar_select %p241, %s240, 5
      %s243 = scalar_lea.vmem %s6, %s242
      %s244 = smul.u32 48, %s19
      %p245 = scmp.lt.s32.totalorder %s244, 95
      %s246 = scalar_select %p245, %s244, 95
      %s247 = smul.addr %s246, 8
      %s248 = scalar_lea.vmem %s0, %s247
      %s249 = smul.u32 48, %s19
      %s250 = smul.u32 3, %s19
      %p251 = scmp.lt.s32.totalorder %s250, 5
      %s252 = scalar_select %p251, %s250, 5
      %s253 = scalar_lea.vmem %s6, %s252
      %s254 = smul.u32 3, %s19
      %v256 = vld [vmem:[%s248] sm:$0xff]
      %v257 = vld [vmem:[%s248 + $0x8] sm:$0xff]
      %v258 = vld [vmem:[%s248 + $0x10] sm:$0xff]
      %v259 = vld [vmem:[%s248 + $0x18] sm:$0xff]
      %v260 = vld [vmem:[%s248 + $0x20] sm:$0xff]
      %v261 = vld [vmem:[%s248 + $0x28] sm:$0xff]
      %v262 = vld [vmem:[%s248 + $0x30] sm:$0xff]
      %v263 = vld [vmem:[%s248 + $0x38] sm:$0xff]
      %v264 = vld [vmem:[%s248 + $0x40] sm:$0xff]
      %v265 = vld [vmem:[%s248 + $0x48] sm:$0xff]
      %v266 = vld [vmem:[%s248 + $0x50] sm:$0xff]
      %v267 = vld [vmem:[%s248 + $0x58] sm:$0xff]
      %v268 = vld [vmem:[%s248 + $0x60] sm:$0xff]
      %v269 = vld [vmem:[%s248 + $0x68] sm:$0xff]
      %v270 = vld [vmem:[%s248 + $0x70] sm:$0xff]
      %v271 = vld [vmem:[%s248 + $0x78] sm:$0xff]
      %v272 = vld [vmem:[%s248 + $0x80] sm:$0xff]
      %v273 = vld [vmem:[%s248 + $0x88] sm:$0xff]
      %v274 = vld [vmem:[%s248 + $0x90] sm:$0xff]
      %v275 = vld [vmem:[%s248 + $0x98] sm:$0xff]
      %v276 = vld [vmem:[%s248 + $0xa0] sm:$0xff]
      %v277 = vld [vmem:[%s248 + $0xa8] sm:$0xff]
      %v278 = vld [vmem:[%s248 + $0xb0] sm:$0xff]
      %v279 = vld [vmem:[%s248 + $0xb8] sm:$0xff]
      %v280 = vld [vmem:[%s248 + $0xc0] sm:$0xff]
      %v281 = vld [vmem:[%s248 + $0xc8] sm:$0xff]
      %v282 = vld [vmem:[%s248 + $0xd0] sm:$0xff]
      %v283 = vld [vmem:[%s248 + $0xd8] sm:$0xff]
      %v284 = vld [vmem:[%s248 + $0xe0] sm:$0xff]
      %v285 = vld [vmem:[%s248 + $0xe8] sm:$0xff]
      %v286 = vld [vmem:[%s248 + $0xf0] sm:$0xff]
      %v287 = vld [vmem:[%s248 + $0xf8] sm:$0xff]
      %v288 = vld [vmem:[%s248 + $0x100] sm:$0xff]
      %v289 = vld [vmem:[%s248 + $0x108] sm:$0xff]
      %v290 = vld [vmem:[%s248 + $0x110] sm:$0xff]
      %v291 = vld [vmem:[%s248 + $0x118] sm:$0xff]
      %v292 = vld [vmem:[%s248 + $0x120] sm:$0xff]
      %v293 = vld [vmem:[%s248 + $0x128] sm:$0xff]
      %v294 = vld [vmem:[%s248 + $0x130] sm:$0xff]
      %v295 = vld [vmem:[%s248 + $0x138] sm:$0xff]
      %v296 = vld [vmem:[%s248 + $0x140] sm:$0xff]
      %v297 = vld [vmem:[%s248 + $0x148] sm:$0xff]
      %v298 = vld [vmem:[%s248 + $0x150] sm:$0xff]
      %v299 = vld [vmem:[%s248 + $0x158] sm:$0xff]
      %v300 = vld [vmem:[%s248 + $0x160] sm:$0xff]
      %v301 = vld [vmem:[%s248 + $0x168] sm:$0xff]
      %v302 = vld [vmem:[%s248 + $0x170] sm:$0xff]
      %v303 = vld [vmem:[%s248 + $0x178] sm:$0xff]
      %v304 = vpack.c.bf16 %v257, %v256
      %v305 = vpack.c.bf16 %v259, %v258
      %v306 = vpack.c.bf16 %v261, %v260
      %v307 = vpack.c.bf16 %v263, %v262
      %v308 = vpack.c.bf16 %v265, %v264
      %v309 = vpack.c.bf16 %v267, %v266
      %v310 = vpack.c.bf16 %v269, %v268
      %v311 = vpack.c.bf16 %v271, %v270
      %v312 = vpack.c.bf16 %v273, %v272
      %v313 = vpack.c.bf16 %v275, %v274
      %v314 = vpack.c.bf16 %v277, %v276
      %v315 = vpack.c.bf16 %v279, %v278
      %v316 = vpack.c.bf16 %v281, %v280
      %v317 = vpack.c.bf16 %v283, %v282
      %v318 = vpack.c.bf16 %v285, %v284
      %v319 = vpack.c.bf16 %v287, %v286
      %v320 = vpack.c.bf16 %v289, %v288
      %v321 = vpack.c.bf16 %v291, %v290
      %v322 = vpack.c.bf16 %v293, %v292
      %v323 = vpack.c.bf16 %v295, %v294
      %v324 = vpack.c.bf16 %v297, %v296
      %v325 = vpack.c.bf16 %v299, %v298
      %v326 = vpack.c.bf16 %v301, %v300
      %v327 = vpack.c.bf16 %v303, %v302
      %v328 = vld [vmem:[%s1] sm:$0xf]
      %v329 = vld [vmem:[%s1 + $0x4] sm:$0xf]
      %v330 = vld [vmem:[%s1 + $0x8] sm:$0xf]
      %v331 = vld [vmem:[%s1 + $0xc] sm:$0xf]
      %v332 = vld [vmem:[%s1 + $0x10] sm:$0xf]
      %v333 = vld [vmem:[%s1 + $0x14] sm:$0xf]
      %v334 = vld [vmem:[%s1 + $0x18] sm:$0xf]
      %v335 = vld [vmem:[%s1 + $0x1c] sm:$0xf]
      %v336 = vld [vmem:[%s1 + $0x20] sm:$0xf]
      %v337 = vld [vmem:[%s1 + $0x24] sm:$0xf]
      %v338 = vld [vmem:[%s3] sm:$0xff]
      %v339 = vld [vmem:[%s3 + $0x8] sm:$0xff]
      %v340 = vld [vmem:[%s3 + $0x10] sm:$0xff]
      %v341 = vld [vmem:[%s3 + $0x18] sm:$0xff]
      %v342 = vld [vmem:[%s3 + $0x20] sm:$0xff]
      %v343 = vld [vmem:[%s3 + $0x28] sm:$0xff]
      %v344 = vld [vmem:[%s3 + $0x30] sm:$0xff]
      %v345 = vld [vmem:[%s3 + $0x38] sm:$0xff]
      %v346 = vld [vmem:[%s3 + $0x40] sm:$0xff]
      %v347 = vld [vmem:[%s3 + $0x48] sm:$0xff]
      %349 = vset.pattern.permute.xlu0 0
      %350 = vperm.xlu0 %349, %v338
      %v351 = vpop.permute.xlu0 %350
      %354 = vset.pattern.permute.xlu0 0
      %355 = vperm.xlu0 %354, %v339
      %v356 = vpop.permute.xlu0 %355
      %359 = vset.pattern.permute.xlu0 0
      %360 = vperm.xlu0 %359, %v340
      %v361 = vpop.permute.xlu0 %360
      %364 = vset.pattern.permute.xlu0 0
      %365 = vperm.xlu0 %364, %v341
      %v366 = vpop.permute.xlu0 %365
      %369 = vset.pattern.permute.xlu0 0
      %370 = vperm.xlu0 %369, %v342
      %v371 = vpop.permute.xlu0 %370
      %374 = vset.pattern.permute.xlu0 0
      %375 = vperm.xlu0 %374, %v343
      %v376 = vpop.permute.xlu0 %375
      %379 = vset.pattern.permute.xlu0 0
      %380 = vperm.xlu0 %379, %v344
      %v381 = vpop.permute.xlu0 %380
      %384 = vset.pattern.permute.xlu0 0
      %385 = vperm.xlu0 %384, %v345
      %v386 = vpop.permute.xlu0 %385
      %389 = vset.pattern.permute.xlu0 0
      %390 = vperm.xlu0 %389, %v346
      %v391 = vpop.permute.xlu0 %390
      %394 = vset.pattern.permute.xlu0 0
      %395 = vperm.xlu0 %394, %v347
      %v396 = vpop.permute.xlu0 %395
      %v408 = vunpack.c.l.b16 %v328
      %v409 = vunpack.c.l.b16 %v329
      %v410 = vunpack.c.l.b16 %v330
      %v411 = vunpack.c.l.b16 %v331
      %v412 = vunpack.c.l.b16 %v332
      %v413 = vunpack.c.l.b16 %v333
      %v414 = vunpack.c.l.b16 %v334
      %v415 = vunpack.c.l.b16 %v335
      %v416 = vunpack.c.l.b16 %v336
      %v417 = vunpack.c.l.b16 %v337
      %v418 = vpack.c.b16 %v409, %v408
      %v419 = vpack.c.b16 %v411, %v410
      %v420 = vpack.c.b16 %v413, %v412
      %v421 = vpack.c.b16 %v415, %v414
      %v422 = vpack.c.b16 %v417, %v416
      %vm423 = vcmask 31744
      %v425 = vsel %vm423, %v418, 0
      %v428 = vsel %vm423, %v419, 0
      %v431 = vsel %vm423, %v420, 0
      %v434 = vsel %vm423, %v421, 0
      %v437 = vsel %vm423, %v422, 0
      %v440 = vsel %vm423, %v304, 0
      %v443 = vsel %vm423, %v305, 0
      %v446 = vsel %vm423, %v306, 0
      %v449 = vsel %vm423, %v307, 0
      %v452 = vsel %vm423, %v308, 0
      %v455 = vsel %vm423, %v309, 0
      %v458 = vsel %vm423, %v310, 0
      %v461 = vsel %vm423, %v311, 0
      %v464 = vsel %vm423, %v312, 0
      %v467 = vsel %vm423, %v313, 0
      %v470 = vsel %vm423, %v314, 0
      %v473 = vsel %vm423, %v315, 0
      %v476 = vsel %vm423, %v316, 0
      %v479 = vsel %vm423, %v317, 0
      %v482 = vsel %vm423, %v318, 0
      %v485 = vsel %vm423, %v319, 0
      %v488 = vsel %vm423, %v320, 0
      %v491 = vsel %vm423, %v321, 0
      %v494 = vsel %vm423, %v322, 0
      %v497 = vsel %vm423, %v323, 0
      %v500 = vsel %vm423, %v324, 0
      %v503 = vsel %vm423, %v325, 0
      %v506 = vsel %vm423, %v326, 0
      %v509 = vsel %vm423, %v327, 0
      %511 = vmatprep.subr.bf16.mxu0 0
      %512 = vmatpush1.bf16.xpose.msra.mxu0 %v440
      %513 = vmatprep.subr.bf16.mxu0 0
      %514 = vmatpush1.bf16.xpose.msra.mxu0 %v443
      %515 = vmatprep.subr.bf16.mxu0 0
      %516 = vmatpush1.bf16.xpose.msra.mxu0 %v446
      %517 = vmatprep.subr.bf16.mxu0 0
      %518 = vmatpush1.bf16.xpose.msra.mxu0 %v449
      %519 = vmatprep.subr.bf16.mxu0 0
      %520 = vmatpush1.bf16.xpose.msra.mxu0 %v452
      %521 = vmatprep.subr.bf16.mxu0 0
      %522 = vmatpush1.bf16.xpose.msra.mxu0 %v455
      %523 = vmatprep.subr.bf16.mxu0 0
      %524 = vmatpush1.bf16.xpose.msra.mxu0 %v458
      %525 = vmatprep.subr.bf16.mxu0 0
      %526 = vmatpush1.bf16.xpose.msra.mxu0 %v461
      %527 = vmatprep.subr.bf16.mxu0 0
      %528 = vmatpush1.bf16.xpose.msra.mxu0 %v464
      %529 = vmatprep.subr.bf16.mxu0 0
      %530 = vmatpush1.bf16.xpose.msra.mxu0 %v467
      %531 = vmatprep.subr.bf16.mxu0 0
      %532 = vmatpush1.bf16.xpose.msra.mxu0 %v470
      %533 = vmatprep.subr.bf16.mxu0 0
      %534 = vmatpush1.bf16.xpose.msra.mxu0 %v473
      %535 = vmatprep.subr.bf16.mxu0 0
      %536 = vmatpush1.bf16.xpose.msra.mxu0 %v476
      %537 = vmatprep.subr.bf16.mxu0 0
      %538 = vmatpush1.bf16.xpose.msra.mxu0 %v479
      %539 = vmatprep.subr.bf16.mxu0 0
      %540 = vmatpush1.bf16.xpose.msra.mxu0 %v482
      %541 = vmatprep.subr.bf16.mxu0 0
      %542 = vmatpush1.bf16.xpose.msra.mxu0 %v485
      %543 = vmatprep.mubr.bf16.mxu0 0
      %544 = vmatmul.mubr.bf16.gmra.mrb[0].mxu0 %v425
      %v545 = vpop.f32.mrb[0].mxu0
      %v546 = vadd.f32 %v351, %v545
      %v547 = vpop.f32.mrb[0].mxu0
      %v548 = vadd.f32 %v351, %v547
      %v549 = vpop.f32.mrb[0].mxu0
      %v550 = vadd.f32 %v356, %v549
      %v551 = vpop.f32.mrb[0].mxu0
      %v552 = vadd.f32 %v356, %v551
      %553 = vmatprep.mubr.bf16.mxu0 0
      %554 = vmatmul.mubr.bf16.gmra.mrb[0].mxu0 %v428
      %v555 = vpop.f32.mrb[0].mxu0
      %v556 = vadd.f32 %v361, %v555
      %v557 = vpop.f32.mrb[0].mxu0
      %v558 = vadd.f32 %v361, %v557
      %v559 = vpop.f32.mrb[0].mxu0
      %v560 = vadd.f32 %v366, %v559
      %v561 = vpop.f32.mrb[0].mxu0
      %v562 = vadd.f32 %v366, %v561
      %563 = vmatprep.mubr.bf16.mxu0 0
      %564 = vmatmul.mubr.bf16.gmra.mrb[0].mxu0 %v431
      %v565 = vpop.f32.mrb[0].mxu0
      %v566 = vadd.f32 %v371, %v565
      %v567 = vpop.f32.mrb[0].mxu0
      %v568 = vadd.f32 %v371, %v567
      %v569 = vpop.f32.mrb[0].mxu0
      %v570 = vadd.f32 %v376, %v569
      %v571 = vpop.f32.mrb[0].mxu0
      %v572 = vadd.f32 %v376, %v571
      %573 = vmatprep.mubr.bf16.mxu0 0
      %574 = vmatmul.mubr.bf16.gmra.mrb[0].mxu0 %v434
      %v575 = vpop.f32.mrb[0].mxu0
      %v576 = vadd.f32 %v381, %v575
      %v577 = vpop.f32.mrb[0].mxu0
      %v578 = vadd.f32 %v381, %v577
      %v579 = vpop.f32.mrb[0].mxu0
      %v580 = vadd.f32 %v386, %v579
      %v581 = vpop.f32.mrb[0].mxu0
      %v582 = vadd.f32 %v386, %v581
      %583 = vmatprep.mubr.bf16.mxu0 0
      %584 = vmatmul.mubr.bf16.gmra.mrb[0].mxu0 %v437
      %v585 = vpop.f32.mrb[0].mxu0
      %v586 = vadd.f32 %v391, %v585
      %v587 = vpop.f32.mrb[0].mxu0
      %v588 = vadd.f32 %v391, %v587
      %v589 = vpop.f32.mrb[0].mxu0
      %v590 = vadd.f32 %v396, %v589
      %v591 = vpop.f32.mrb[0].mxu0
      %v592 = vadd.f32 %v396, %v591
      %593 = vdwg.mxu0
      %594 = vmatprep.subr.bf16.mxu0 0
      %595 = vmatpush1.bf16.xpose.msra.mxu0 %v488
      %596 = vmatprep.subr.bf16.mxu0 0
      %597 = vmatpush1.bf16.xpose.msra.mxu0 %v491
      %598 = vmatprep.subr.bf16.mxu0 0
      %599 = vmatpush1.bf16.xpose.msra.mxu0 %v494
      %600 = vmatprep.subr.bf16.mxu0 0
      %601 = vmatpush1.bf16.xpose.msra.mxu0 %v497
      %602 = vmatprep.subr.bf16.mxu0 0
      %603 = vmatpush1.bf16.xpose.msra.mxu0 %v500
      %604 = vmatprep.subr.bf16.mxu0 0
      %605 = vmatpush1.bf16.xpose.msra.mxu0 %v503
      %606 = vmatprep.subr.bf16.mxu0 0
      %607 = vmatpush1.bf16.xpose.msra.mxu0 %v506
      %608 = vmatprep.subr.bf16.mxu0 0
      %609 = vmatpush1.bf16.xpose.msra.mxu0 %v509
      %610 = vmatprep.subr.bf16.mxu0 0
      %611 = vmatpush1.bf16.xpose.msra.mxu0 0
      %612 = vmatprep.subr.bf16.mxu0 0
      %613 = vmatpush1.bf16.xpose.msra.mxu0 0
      %614 = vmatprep.subr.bf16.mxu0 0
      %615 = vmatpush1.bf16.xpose.msra.mxu0 0
      %616 = vmatprep.subr.bf16.mxu0 0
      %617 = vmatpush1.bf16.xpose.msra.mxu0 0
      %618 = vmatprep.subr.bf16.mxu0 0
      %619 = vmatpush1.bf16.xpose.msra.mxu0 0
      %620 = vmatprep.subr.bf16.mxu0 0
      %621 = vmatpush1.bf16.xpose.msra.mxu0 0
      %622 = vmatprep.subr.bf16.mxu0 0
      %623 = vmatpush1.bf16.xpose.msra.mxu0 0
      %624 = vmatprep.subr.bf16.mxu0 0
      %625 = vmatpush1.bf16.xpose.msra.mxu0 0
      %626 = vmatprep.mubr.bf16.mxu0 0
      %627 = vmatmul.mubr.bf16.gmra.mrb[0].mxu0 %v425
      %v628 = vpop.f32.mrb[0].mxu0
      %v629 = vadd.f32 %v351, %v628
      %v630 = vpop.f32.mrb[0].mxu0
      %v631 = vpop.f32.mrb[0].mxu0
      %v632 = vadd.f32 %v356, %v631
      %v633 = vpop.f32.mrb[0].mxu0
      %634 = vmatprep.mubr.bf16.mxu0 0
      %635 = vmatmul.mubr.bf16.gmra.mrb[0].mxu0 %v428
      %v636 = vpop.f32.mrb[0].mxu0
      %v637 = vadd.f32 %v361, %v636
      %v638 = vpop.f32.mrb[0].mxu0
      %v639 = vpop.f32.mrb[0].mxu0
      %v640 = vadd.f32 %v366, %v639
      %v641 = vpop.f32.mrb[0].mxu0
      %642 = vmatprep.mubr.bf16.mxu0 0
      %643 = vmatmul.mubr.bf16.gmra.mrb[0].mxu0 %v431
      %v644 = vpop.f32.mrb[0].mxu0
      %v645 = vadd.f32 %v371, %v644
      %v646 = vpop.f32.mrb[0].mxu0
      %v647 = vpop.f32.mrb[0].mxu0
      %v648 = vadd.f32 %v376, %v647
      %v649 = vpop.f32.mrb[0].mxu0
      %650 = vmatprep.mubr.bf16.mxu0 0
      %651 = vmatmul.mubr.bf16.gmra.mrb[0].mxu0 %v434
      %v652 = vpop.f32.mrb[0].mxu0
      %v653 = vadd.f32 %v381, %v652
      %v654 = vpop.f32.mrb[0].mxu0
      %v655 = vpop.f32.mrb[0].mxu0
      %v656 = vadd.f32 %v386, %v655
      %v657 = vpop.f32.mrb[0].mxu0
      %658 = vmatprep.mubr.bf16.mxu0 0
      %659 = vmatmul.mubr.bf16.gmra.mrb[0].mxu0 %v437
      %v660 = vpop.f32.mrb[0].mxu0
      %v661 = vadd.f32 %v391, %v660
      %v662 = vpop.f32.mrb[0].mxu0
      %v663 = vpop.f32.mrb[0].mxu0
      %v664 = vadd.f32 %v396, %v663
      %v665 = vpop.f32.mrb[0].mxu0
      %666 = vdwg.mxu0
      %v667 = vtanh.pop %v546
      %v668 = vtanh.pop %v548
      %v669 = vtanh.pop %v629
      %v670 = vtanh.pop %v550
      %v671 = vtanh.pop %v552
      %v672 = vtanh.pop %v632
      %v673 = vtanh.pop %v556
      %v674 = vtanh.pop %v558
      %v675 = vtanh.pop %v637
      %v676 = vtanh.pop %v560
      %v677 = vtanh.pop %v562
      %v678 = vtanh.pop %v640
      %v679 = vtanh.pop %v566
      %v680 = vtanh.pop %v568
      %v681 = vtanh.pop %v645
      %v682 = vtanh.pop %v570
      %v683 = vtanh.pop %v572
      %v684 = vtanh.pop %v648
      %v685 = vtanh.pop %v576
      %v686 = vtanh.pop %v578
      %v687 = vtanh.pop %v653
      %v688 = vtanh.pop %v580
      %v689 = vtanh.pop %v582
      %v690 = vtanh.pop %v656
      %v691 = vtanh.pop %v586
      %v692 = vtanh.pop %v588
      %v693 = vtanh.pop %v661
      %v694 = vtanh.pop %v590
      %v695 = vtanh.pop %v592
      %v696 = vtanh.pop %v664
      %v697 = vpack.c.bf16 %v670, %v667
      %v698 = vpack.c.bf16 %v671, %v668
      %v699 = vpack.c.bf16 %v672, %v669
      %v700 = vpack.c.bf16 %v676, %v673
      %v701 = vpack.c.bf16 %v677, %v674
      %v702 = vpack.c.bf16 %v678, %v675
      %v703 = vpack.c.bf16 %v682, %v679
      %v704 = vpack.c.bf16 %v683, %v680
      %v705 = vpack.c.bf16 %v684, %v681
      %v706 = vpack.c.bf16 %v688, %v685
      %v707 = vpack.c.bf16 %v689, %v686
      %v708 = vpack.c.bf16 %v690, %v687
      %v709 = vpack.c.bf16 %v694, %v691
      %v710 = vpack.c.bf16 %v695, %v692
      %v711 = vpack.c.bf16 %v696, %v693
      %v712 = vld [vmem:[%s2] sm:$0xf]
      %v713 = vld [vmem:[%s2 + $0x4] sm:$0xf]
      %v714 = vld [vmem:[%s2 + $0x8] sm:$0xf]
      %v715 = vld [vmem:[%s2 + $0xc] sm:$0xf]
      %v716 = vld [vmem:[%s2 + $0x10] sm:$0xf]
      %v717 = vld [vmem:[%s2 + $0x14] sm:$0xf]
      %v718 = vld [vmem:[%s2 + $0x18] sm:$0xf]
      %v719 = vld [vmem:[%s2 + $0x1c] sm:$0xf]
      %v720 = vld [vmem:[%s2 + $0x20] sm:$0xf]
      %v721 = vld [vmem:[%s2 + $0x24] sm:$0xf]
      %722 = vset.pattern.permute.xlu0 1
      %723 = vperm.xlu0 %722, %v338
      %v724 = vpop.permute.xlu0 %723
      %726 = vset.pattern.permute.xlu0 1
      %727 = vperm.xlu0 %726, %v339
      %v728 = vpop.permute.xlu0 %727
      %730 = vset.pattern.permute.xlu0 1
      %731 = vperm.xlu0 %730, %v340
      %v732 = vpop.permute.xlu0 %731
      %734 = vset.pattern.permute.xlu0 1
      %735 = vperm.xlu0 %734, %v341
      %v736 = vpop.permute.xlu0 %735
      %738 = vset.pattern.permute.xlu0 1
      %739 = vperm.xlu0 %738, %v342
      %v740 = vpop.permute.xlu0 %739
      %742 = vset.pattern.permute.xlu0 1
      %743 = vperm.xlu0 %742, %v343
      %v744 = vpop.permute.xlu0 %743
      %746 = vset.pattern.permute.xlu0 1
      %747 = vperm.xlu0 %746, %v344
      %v748 = vpop.permute.xlu0 %747
      %750 = vset.pattern.permute.xlu0 1
      %751 = vperm.xlu0 %750, %v345
      %v752 = vpop.permute.xlu0 %751
      %754 = vset.pattern.permute.xlu0 1
      %755 = vperm.xlu0 %754, %v346
      %v756 = vpop.permute.xlu0 %755
      %758 = vset.pattern.permute.xlu0 1
      %759 = vperm.xlu0 %758, %v347
      %v760 = vpop.permute.xlu0 %759
      %v772 = vunpack.c.l.b16 %v712
      %v773 = vunpack.c.l.b16 %v713
      %v774 = vunpack.c.l.b16 %v714
      %v775 = vunpack.c.l.b16 %v715
      %v776 = vunpack.c.l.b16 %v716
      %v777 = vunpack.c.l.b16 %v717
      %v778 = vunpack.c.l.b16 %v718
      %v779 = vunpack.c.l.b16 %v719
      %v780 = vunpack.c.l.b16 %v720
      %v781 = vunpack.c.l.b16 %v721
      %v782 = vpack.c.b16 %v773, %v772
      %v783 = vpack.c.b16 %v775, %v774
      %v784 = vpack.c.b16 %v777, %v776
      %v785 = vpack.c.b16 %v779, %v778
      %v786 = vpack.c.b16 %v781, %v780
      %vm787 = vcmask 654336
      %v789 = vsel %vm787, %v782, 0
      %v792 = vsel %vm787, %v783, 0
      %v795 = vsel %vm787, %v784, 0
      %v798 = vsel %vm787, %v785, 0
      %v801 = vsel %vm787, %v786, 0
      %803 = vmatprep.subr.bf16.mxu0 %v698
      %804 = vmatpush1.bf16.msra.mxu0 %v697
      %805 = vmatprep.subr.bf16.mxu0 %v701
      %806 = vmatpush1.bf16.msra.mxu0 %v700
      %807 = vmatprep.subr.bf16.mxu0 %v704
      %808 = vmatpush1.bf16.msra.mxu0 %v703
      %809 = vmatprep.subr.bf16.mxu0 %v707
      %810 = vmatpush1.bf16.msra.mxu0 %v706
      %811 = vmatprep.subr.bf16.mxu0 %v710
      %812 = vmatpush1.bf16.msra.mxu0 %v709
      %813 = vmatprep.subr.bf16.mxu0 0
      %814 = vmatpush1.bf16.msra.mxu0 0
      %815 = vmatprep.subr.bf16.mxu0 0
      %816 = vmatpush1.bf16.msra.mxu0 0
      %817 = vmatprep.subr.bf16.mxu0 0
      %818 = vmatpush1.bf16.msra.mxu0 0
      %819 = vmatprep.subr.bf16.mxu0 0
      %820 = vmatpush1.bf16.msra.mxu0 0
      %821 = vmatprep.subr.bf16.mxu0 0
      %822 = vmatpush1.bf16.msra.mxu0 0
      %823 = vmatprep.subr.bf16.mxu0 0
      %824 = vmatpush1.bf16.msra.mxu0 0
      %825 = vmatprep.subr.bf16.mxu0 0
      %826 = vmatpush1.bf16.msra.mxu0 0
      %827 = vmatprep.subr.bf16.mxu0 0
      %828 = vmatpush1.bf16.msra.mxu0 0
      %829 = vmatprep.subr.bf16.mxu0 0
      %830 = vmatpush1.bf16.msra.mxu0 0
      %831 = vmatprep.subr.bf16.mxu0 0
      %832 = vmatpush1.bf16.msra.mxu0 0
      %833 = vmatprep.subr.bf16.mxu0 0
      %834 = vmatpush1.bf16.msra.mxu0 0
      %835 = vmatprep.mubr.bf16.mxu0 0
      %836 = vmatmul.mubr.bf16.gmra.mrb[0].mxu0 %v789
      %v837 = vpop.f32.mrb[0].mxu0
      %v838 = vadd.f32 %v724, %v837
      %v839 = vpop.f32.mrb[0].mxu0
      %v840 = vadd.f32 %v724, %v839
      %v841 = vpop.f32.mrb[0].mxu0
      %v842 = vadd.f32 %v728, %v841
      %v843 = vpop.f32.mrb[0].mxu0
      %v844 = vadd.f32 %v728, %v843
      %845 = vmatprep.mubr.bf16.mxu0 0
      %846 = vmatmul.mubr.bf16.gmra.mrb[0].mxu0 %v792
      %v847 = vpop.f32.mrb[0].mxu0
      %v848 = vadd.f32 %v732, %v847
      %v849 = vpop.f32.mrb[0].mxu0
      %v850 = vadd.f32 %v732, %v849
      %v851 = vpop.f32.mrb[0].mxu0
      %v852 = vadd.f32 %v736, %v851
      %v853 = vpop.f32.mrb[0].mxu0
      %v854 = vadd.f32 %v736, %v853
      %855 = vmatprep.mubr.bf16.mxu0 0
      %856 = vmatmul.mubr.bf16.gmra.mrb[0].mxu0 %v795
      %v857 = vpop.f32.mrb[0].mxu0
      %v858 = vadd.f32 %v740, %v857
      %v859 = vpop.f32.mrb[0].mxu0
      %v860 = vadd.f32 %v740, %v859
      %v861 = vpop.f32.mrb[0].mxu0
      %v862 = vadd.f32 %v744, %v861
      %v863 = vpop.f32.mrb[0].mxu0
      %v864 = vadd.f32 %v744, %v863
      %865 = vmatprep.mubr.bf16.mxu0 0
      %866 = vmatmul.mubr.bf16.gmra.mrb[0].mxu0 %v798
      %v867 = vpop.f32.mrb[0].mxu0
      %v868 = vadd.f32 %v748, %v867
      %v869 = vpop.f32.mrb[0].mxu0
      %v870 = vadd.f32 %v748, %v869
      %v871 = vpop.f32.mrb[0].mxu0
      %v872 = vadd.f32 %v752, %v871
      %v873 = vpop.f32.mrb[0].mxu0
      %v874 = vadd.f32 %v752, %v873
      %875 = vmatprep.mubr.bf16.mxu0 0
      %876 = vmatmul.mubr.bf16.gmra.mrb[0].mxu0 %v801
      %v877 = vpop.f32.mrb[0].mxu0
      %v878 = vadd.f32 %v756, %v877
      %v879 = vpop.f32.mrb[0].mxu0
      %v880 = vadd.f32 %v756, %v879
      %v881 = vpop.f32.mrb[0].mxu0
      %v882 = vadd.f32 %v760, %v881
      %v883 = vpop.f32.mrb[0].mxu0
      %v884 = vadd.f32 %v760, %v883
      %885 = vdwg.mxu0
      %886 = vmatprep.subr.bf16.mxu0 0
      %887 = vmatpush1.bf16.msra.mxu0 %v699
      %888 = vmatprep.subr.bf16.mxu0 0
      %889 = vmatpush1.bf16.msra.mxu0 %v702
      %890 = vmatprep.subr.bf16.mxu0 0
      %891 = vmatpush1.bf16.msra.mxu0 %v705
      %892 = vmatprep.subr.bf16.mxu0 0
      %893 = vmatpush1.bf16.msra.mxu0 %v708
      %894 = vmatprep.subr.bf16.mxu0 0
      %895 = vmatpush1.bf16.msra.mxu0 %v711
      %896 = vmatprep.subr.bf16.mxu0 0
      %897 = vmatpush1.bf16.msra.mxu0 0
      %898 = vmatprep.subr.bf16.mxu0 0
      %899 = vmatpush1.bf16.msra.mxu0 0
      %900 = vmatprep.subr.bf16.mxu0 0
      %901 = vmatpush1.bf16.msra.mxu0 0
      %902 = vmatprep.subr.bf16.mxu0 0
      %903 = vmatpush1.bf16.msra.mxu0 0
      %904 = vmatprep.subr.bf16.mxu0 0
      %905 = vmatpush1.bf16.msra.mxu0 0
      %906 = vmatprep.subr.bf16.mxu0 0
      %907 = vmatpush1.bf16.msra.mxu0 0
      %908 = vmatprep.subr.bf16.mxu0 0
      %909 = vmatpush1.bf16.msra.mxu0 0
      %910 = vmatprep.subr.bf16.mxu0 0
      %911 = vmatpush1.bf16.msra.mxu0 0
      %912 = vmatprep.subr.bf16.mxu0 0
      %913 = vmatpush1.bf16.msra.mxu0 0
      %914 = vmatprep.subr.bf16.mxu0 0
      %915 = vmatpush1.bf16.msra.mxu0 0
      %916 = vmatprep.subr.bf16.mxu0 0
      %917 = vmatpush1.bf16.msra.mxu0 0
      %918 = vmatprep.mubr.bf16.mxu0 0
      %919 = vmatmul.mubr.bf16.gmra.mrb[0].mxu0 %v789
      %v920 = vpop.f32.mrb[0].mxu0
      %v921 = vadd.f32 %v724, %v920
      %v922 = vpop.f32.mrb[0].mxu0
      %v923 = vpop.f32.mrb[0].mxu0
      %v924 = vadd.f32 %v728, %v923
      %v925 = vpop.f32.mrb[0].mxu0
      %926 = vmatprep.mubr.bf16.mxu0 0
      %927 = vmatmul.mubr.bf16.gmra.mrb[0].mxu0 %v792
      %v928 = vpop.f32.mrb[0].mxu0
      %v929 = vadd.f32 %v732, %v928
      %v930 = vpop.f32.mrb[0].mxu0
      %v931 = vpop.f32.mrb[0].mxu0
      %v932 = vadd.f32 %v736, %v931
      %v933 = vpop.f32.mrb[0].mxu0
      %934 = vmatprep.mubr.bf16.mxu0 0
      %935 = vmatmul.mubr.bf16.gmra.mrb[0].mxu0 %v795
      %v936 = vpop.f32.mrb[0].mxu0
      %v937 = vadd.f32 %v740, %v936
      %v938 = vpop.f32.mrb[0].mxu0
      %v939 = vpop.f32.mrb[0].mxu0
      %v940 = vadd.f32 %v744, %v939
      %v941 = vpop.f32.mrb[0].mxu0
      %942 = vmatprep.mubr.bf16.mxu0 0
      %943 = vmatmul.mubr.bf16.gmra.mrb[0].mxu0 %v798
      %v944 = vpop.f32.mrb[0].mxu0
      %v945 = vadd.f32 %v748, %v944
      %v946 = vpop.f32.mrb[0].mxu0
      %v947 = vpop.f32.mrb[0].mxu0
      %v948 = vadd.f32 %v752, %v947
      %v949 = vpop.f32.mrb[0].mxu0
      %950 = vmatprep.mubr.bf16.mxu0 0
      %951 = vmatmul.mubr.bf16.gmra.mrb[0].mxu0 %v801
      %v952 = vpop.f32.mrb[0].mxu0
      %v953 = vadd.f32 %v756, %v952
      %v954 = vpop.f32.mrb[0].mxu0
      %v955 = vpop.f32.mrb[0].mxu0
      %v956 = vadd.f32 %v760, %v955
      %v957 = vpop.f32.mrb[0].mxu0
      %958 = vdwg.mxu0
      %v959 = vtanh.pop %v838
      %v960 = vtanh.pop %v840
      %v961 = vtanh.pop %v921
      %v962 = vtanh.pop %v842
      %v963 = vtanh.pop %v844
      %v964 = vtanh.pop %v924
      %v965 = vtanh.pop %v848
      %v966 = vtanh.pop %v850
      %v967 = vtanh.pop %v929
      %v968 = vtanh.pop %v852
      %v969 = vtanh.pop %v854
      %v970 = vtanh.pop %v932
      %v971 = vtanh.pop %v858
      %v972 = vtanh.pop %v860
      %v973 = vtanh.pop %v937
      %v974 = vtanh.pop %v862
      %v975 = vtanh.pop %v864
      %v976 = vtanh.pop %v940
      %v977 = vtanh.pop %v868
      %v978 = vtanh.pop %v870
      %v979 = vtanh.pop %v945
      %v980 = vtanh.pop %v872
      %v981 = vtanh.pop %v874
      %v982 = vtanh.pop %v948
      %v983 = vtanh.pop %v878
      %v984 = vtanh.pop %v880
      %v985 = vtanh.pop %v953
      %v986 = vtanh.pop %v882
      %v987 = vtanh.pop %v884
      %v988 = vtanh.pop %v956
      %v989 = vpack.c.bf16 %v962, %v959
      %v990 = vpack.c.bf16 %v963, %v960
      %v991 = vpack.c.bf16 %v964, %v961
      %v992 = vpack.c.bf16 %v968, %v965
      %v993 = vpack.c.bf16 %v969, %v966
      %v994 = vpack.c.bf16 %v970, %v967
      %v995 = vpack.c.bf16 %v974, %v971
      %v996 = vpack.c.bf16 %v975, %v972
      %v997 = vpack.c.bf16 %v976, %v973
      %v998 = vpack.c.bf16 %v980, %v977
      %v999 = vpack.c.bf16 %v981, %v978
      %v1000 = vpack.c.bf16 %v982, %v979
      %v1001 = vpack.c.bf16 %v986, %v983
      %v1002 = vpack.c.bf16 %v987, %v984
      %v1003 = vpack.c.bf16 %v988, %v985
      %s1004 = scalar_lea.vmem %s2, 40
      %v1005 = vld [vmem:[%s1004] sm:$0xf]
      %v1006 = vld [vmem:[%s1004 + $0x4] sm:$0xf]
      %v1007 = vld [vmem:[%s1004 + $0x8] sm:$0xf]
      %v1008 = vld [vmem:[%s1004 + $0xc] sm:$0xf]
      %v1009 = vld [vmem:[%s1004 + $0x10] sm:$0xf]
      %v1010 = vld [vmem:[%s1004 + $0x14] sm:$0xf]
      %v1011 = vld [vmem:[%s1004 + $0x18] sm:$0xf]
      %v1012 = vld [vmem:[%s1004 + $0x1c] sm:$0xf]
      %v1013 = vld [vmem:[%s1004 + $0x20] sm:$0xf]
      %v1014 = vld [vmem:[%s1004 + $0x24] sm:$0xf]
      %1015 = vset.pattern.permute.xlu0 2
      %1016 = vperm.xlu0 %1015, %v338
      %v1017 = vpop.permute.xlu0 %1016
      %1019 = vset.pattern.permute.xlu0 2
      %1020 = vperm.xlu0 %1019, %v339
      %v1021 = vpop.permute.xlu0 %1020
      %1023 = vset.pattern.permute.xlu0 2
      %1024 = vperm.xlu0 %1023, %v340
      %v1025 = vpop.permute.xlu0 %1024
      %1027 = vset.pattern.permute.xlu0 2
      %1028 = vperm.xlu0 %1027, %v341
      %v1029 = vpop.permute.xlu0 %1028
      %1031 = vset.pattern.permute.xlu0 2
      %1032 = vperm.xlu0 %1031, %v342
      %v1033 = vpop.permute.xlu0 %1032
      %1035 = vset.pattern.permute.xlu0 2
      %1036 = vperm.xlu0 %1035, %v343
      %v1037 = vpop.permute.xlu0 %1036
      %1039 = vset.pattern.permute.xlu0 2
      %1040 = vperm.xlu0 %1039, %v344
      %v1041 = vpop.permute.xlu0 %1040
      %1043 = vset.pattern.permute.xlu0 2
      %1044 = vperm.xlu0 %1043, %v345
      %v1045 = vpop.permute.xlu0 %1044
      %1047 = vset.pattern.permute.xlu0 2
      %1048 = vperm.xlu0 %1047, %v346
      %v1049 = vpop.permute.xlu0 %1048
      %1051 = vset.pattern.permute.xlu0 2
      %1052 = vperm.xlu0 %1051, %v347
      %v1053 = vpop.permute.xlu0 %1052
      %v1065 = vunpack.c.l.b16 %v1005
      %v1066 = vunpack.c.l.b16 %v1006
      %v1067 = vunpack.c.l.b16 %v1007
      %v1068 = vunpack.c.l.b16 %v1008
      %v1069 = vunpack.c.l.b16 %v1009
      %v1070 = vunpack.c.l.b16 %v1010
      %v1071 = vunpack.c.l.b16 %v1011
      %v1072 = vunpack.c.l.b16 %v1012
      %v1073 = vunpack.c.l.b16 %v1013
      %v1074 = vunpack.c.l.b16 %v1014
      %v1075 = vpack.c.b16 %v1066, %v1065
      %v1076 = vpack.c.b16 %v1068, %v1067
      %v1077 = vpack.c.b16 %v1070, %v1069
      %v1078 = vpack.c.b16 %v1072, %v1071
      %v1079 = vpack.c.b16 %v1074, %v1073
      %v1081 = vsel %vm787, %v1075, 0
      %v1084 = vsel %vm787, %v1076, 0
      %v1087 = vsel %vm787, %v1077, 0
      %v1090 = vsel %vm787, %v1078, 0
      %v1093 = vsel %vm787, %v1079, 0
      %1095 = vmatprep.subr.bf16.mxu0 %v990
      %1096 = vmatpush1.bf16.msra.mxu0 %v989
      %1097 = vmatprep.subr.bf16.mxu0 %v993
      %1098 = vmatpush1.bf16.msra.mxu0 %v992
      %1099 = vmatprep.subr.bf16.mxu0 %v996
      %1100 = vmatpush1.bf16.msra.mxu0 %v995
      %1101 = vmatprep.subr.bf16.mxu0 %v999
      %1102 = vmatpush1.bf16.msra.mxu0 %v998
      %1103 = vmatprep.subr.bf16.mxu0 %v1002
      %1104 = vmatpush1.bf16.msra.mxu0 %v1001
      %1105 = vmatprep.subr.bf16.mxu0 0
      %1106 = vmatpush1.bf16.msra.mxu0 0
      %1107 = vmatprep.subr.bf16.mxu0 0
      %1108 = vmatpush1.bf16.msra.mxu0 0
      %1109 = vmatprep.subr.bf16.mxu0 0
      %1110 = vmatpush1.bf16.msra.mxu0 0
      %1111 = vmatprep.subr.bf16.mxu0 0
      %1112 = vmatpush1.bf16.msra.mxu0 0
      %1113 = vmatprep.subr.bf16.mxu0 0
      %1114 = vmatpush1.bf16.msra.mxu0 0
      %1115 = vmatprep.subr.bf16.mxu0 0
      %1116 = vmatpush1.bf16.msra.mxu0 0
      %1117 = vmatprep.subr.bf16.mxu0 0
      %1118 = vmatpush1.bf16.msra.mxu0 0
      %1119 = vmatprep.subr.bf16.mxu0 0
      %1120 = vmatpush1.bf16.msra.mxu0 0
      %1121 = vmatprep.subr.bf16.mxu0 0
      %1122 = vmatpush1.bf16.msra.mxu0 0
      %1123 = vmatprep.subr.bf16.mxu0 0
      %1124 = vmatpush1.bf16.msra.mxu0 0
      %1125 = vmatprep.subr.bf16.mxu0 0
      %1126 = vmatpush1.bf16.msra.mxu0 0
      %1127 = vmatprep.mubr.bf16.mxu0 0
      %1128 = vmatmul.mubr.bf16.gmra.mrb[0].mxu0 %v1081
      %v1129 = vpop.f32.mrb[0].mxu0
      %v1130 = vadd.f32 %v1017, %v1129
      %v1131 = vpop.f32.mrb[0].mxu0
      %v1132 = vadd.f32 %v1017, %v1131
      %v1133 = vpop.f32.mrb[0].mxu0
      %v1134 = vadd.f32 %v1021, %v1133
      %v1135 = vpop.f32.mrb[0].mxu0
      %v1136 = vadd.f32 %v1021, %v1135
      %1137 = vmatprep.mubr.bf16.mxu0 0
      %1138 = vmatmul.mubr.bf16.gmra.mrb[0].mxu0 %v1084
      %v1139 = vpop.f32.mrb[0].mxu0
      %v1140 = vadd.f32 %v1025, %v1139
      %v1141 = vpop.f32.mrb[0].mxu0
      %v1142 = vadd.f32 %v1025, %v1141
      %v1143 = vpop.f32.mrb[0].mxu0
      %v1144 = vadd.f32 %v1029, %v1143
      %v1145 = vpop.f32.mrb[0].mxu0
      %v1146 = vadd.f32 %v1029, %v1145
      %1147 = vmatprep.mubr.bf16.mxu0 0
      %1148 = vmatmul.mubr.bf16.gmra.mrb[0].mxu0 %v1087
      %v1149 = vpop.f32.mrb[0].mxu0
      %v1150 = vadd.f32 %v1033, %v1149
      %v1151 = vpop.f32.mrb[0].mxu0
      %v1152 = vadd.f32 %v1033, %v1151
      %v1153 = vpop.f32.mrb[0].mxu0
      %v1154 = vadd.f32 %v1037, %v1153
      %v1155 = vpop.f32.mrb[0].mxu0
      %v1156 = vadd.f32 %v1037, %v1155
      %1157 = vmatprep.mubr.bf16.mxu0 0
      %1158 = vmatmul.mubr.bf16.gmra.mrb[0].mxu0 %v1090
      %v1159 = vpop.f32.mrb[0].mxu0
      %v1160 = vadd.f32 %v1041, %v1159
      %v1161 = vpop.f32.mrb[0].mxu0
      %v1162 = vadd.f32 %v1041, %v1161
      %v1163 = vpop.f32.mrb[0].mxu0
      %v1164 = vadd.f32 %v1045, %v1163
      %v1165 = vpop.f32.mrb[0].mxu0
      %v1166 = vadd.f32 %v1045, %v1165
      %1167 = vmatprep.mubr.bf16.mxu0 0
      %1168 = vmatmul.mubr.bf16.gmra.mrb[0].mxu0 %v1093
      %v1169 = vpop.f32.mrb[0].mxu0
      %v1170 = vadd.f32 %v1049, %v1169
      %v1171 = vpop.f32.mrb[0].mxu0
      %v1172 = vadd.f32 %v1049, %v1171
      %v1173 = vpop.f32.mrb[0].mxu0
      %v1174 = vadd.f32 %v1053, %v1173
      %v1175 = vpop.f32.mrb[0].mxu0
      %v1176 = vadd.f32 %v1053, %v1175
      %1177 = vdwg.mxu0
      %1178 = vmatprep.subr.bf16.mxu0 0
      %1179 = vmatpush1.bf16.msra.mxu0 %v991
      %1180 = vmatprep.subr.bf16.mxu0 0
      %1181 = vmatpush1.bf16.msra.mxu0 %v994
      %1182 = vmatprep.subr.bf16.mxu0 0
      %1183 = vmatpush1.bf16.msra.mxu0 %v997
      %1184 = vmatprep.subr.bf16.mxu0 0
      %1185 = vmatpush1.bf16.msra.mxu0 %v1000
      %1186 = vmatprep.subr.bf16.mxu0 0
      %1187 = vmatpush1.bf16.msra.mxu0 %v1003
      %1188 = vmatprep.subr.bf16.mxu0 0
      %1189 = vmatpush1.bf16.msra.mxu0 0
      %1190 = vmatprep.subr.bf16.mxu0 0
      %1191 = vmatpush1.bf16.msra.mxu0 0
      %1192 = vmatprep.subr.bf16.mxu0 0
      %1193 = vmatpush1.bf16.msra.mxu0 0
      %1194 = vmatprep.subr.bf16.mxu0 0
      %1195 = vmatpush1.bf16.msra.mxu0 0
      %1196 = vmatprep.subr.bf16.mxu0 0
      %1197 = vmatpush1.bf16.msra.mxu0 0
      %1198 = vmatprep.subr.bf16.mxu0 0
      %1199 = vmatpush1.bf16.msra.mxu0 0
      %1200 = vmatprep.subr.bf16.mxu0 0
      %1201 = vmatpush1.bf16.msra.mxu0 0
      %1202 = vmatprep.subr.bf16.mxu0 0
      %1203 = vmatpush1.bf16.msra.mxu0 0
      %1204 = vmatprep.subr.bf16.mxu0 0
      %1205 = vmatpush1.bf16.msra.mxu0 0
      %1206 = vmatprep.subr.bf16.mxu0 0
      %1207 = vmatpush1.bf16.msra.mxu0 0
      %1208 = vmatprep.subr.bf16.mxu0 0
      %1209 = vmatpush1.bf16.msra.mxu0 0
      %1210 = vmatprep.mubr.bf16.mxu0 0
      %1211 = vmatmul.mubr.bf16.gmra.mrb[0].mxu0 %v1081
      %v1212 = vpop.f32.mrb[0].mxu0
      %v1213 = vadd.f32 %v1017, %v1212
      %v1214 = vpop.f32.mrb[0].mxu0
      %v1215 = vpop.f32.mrb[0].mxu0
      %v1216 = vadd.f32 %v1021, %v1215
      %v1217 = vpop.f32.mrb[0].mxu0
      %1218 = vmatprep.mubr.bf16.mxu0 0
      %1219 = vmatmul.mubr.bf16.gmra.mrb[0].mxu0 %v1084
      %v1220 = vpop.f32.mrb[0].mxu0
      %v1221 = vadd.f32 %v1025, %v1220
      %v1222 = vpop.f32.mrb[0].mxu0
      %v1223 = vpop.f32.mrb[0].mxu0
      %v1224 = vadd.f32 %v1029, %v1223
      %v1225 = vpop.f32.mrb[0].mxu0
      %1226 = vmatprep.mubr.bf16.mxu0 0
      %1227 = vmatmul.mubr.bf16.gmra.mrb[0].mxu0 %v1087
      %v1228 = vpop.f32.mrb[0].mxu0
      %v1229 = vadd.f32 %v1033, %v1228
      %v1230 = vpop.f32.mrb[0].mxu0
      %v1231 = vpop.f32.mrb[0].mxu0
      %v1232 = vadd.f32 %v1037, %v1231
      %v1233 = vpop.f32.mrb[0].mxu0
      %1234 = vmatprep.mubr.bf16.mxu0 0
      %1235 = vmatmul.mubr.bf16.gmra.mrb[0].mxu0 %v1090
      %v1236 = vpop.f32.mrb[0].mxu0
      %v1237 = vadd.f32 %v1041, %v1236
      %v1238 = vpop.f32.mrb[0].mxu0
      %v1239 = vpop.f32.mrb[0].mxu0
      %v1240 = vadd.f32 %v1045, %v1239
      %v1241 = vpop.f32.mrb[0].mxu0
      %1242 = vmatprep.mubr.bf16.mxu0 0
      %1243 = vmatmul.mubr.bf16.gmra.mrb[0].mxu0 %v1093
      %v1244 = vpop.f32.mrb[0].mxu0
      %v1245 = vadd.f32 %v1049, %v1244
      %v1246 = vpop.f32.mrb[0].mxu0
      %v1247 = vpop.f32.mrb[0].mxu0
      %v1248 = vadd.f32 %v1053, %v1247
      %v1249 = vpop.f32.mrb[0].mxu0
      %1250 = vdwg.mxu0
      %v1251 = vtanh.pop %v1130
      %v1252 = vtanh.pop %v1132
      %v1253 = vtanh.pop %v1213
      %v1254 = vtanh.pop %v1134
      %v1255 = vtanh.pop %v1136
      %v1256 = vtanh.pop %v1216
      %v1257 = vtanh.pop %v1140
      %v1258 = vtanh.pop %v1142
      %v1259 = vtanh.pop %v1221
      %v1260 = vtanh.pop %v1144
      %v1261 = vtanh.pop %v1146
      %v1262 = vtanh.pop %v1224
      %v1263 = vtanh.pop %v1150
      %v1264 = vtanh.pop %v1152
      %v1265 = vtanh.pop %v1229
      %v1266 = vtanh.pop %v1154
      %v1267 = vtanh.pop %v1156
      %v1268 = vtanh.pop %v1232
      %v1269 = vtanh.pop %v1160
      %v1270 = vtanh.pop %v1162
      %v1271 = vtanh.pop %v1237
      %v1272 = vtanh.pop %v1164
      %v1273 = vtanh.pop %v1166
      %v1274 = vtanh.pop %v1240
      %v1275 = vtanh.pop %v1170
      %v1276 = vtanh.pop %v1172
      %v1277 = vtanh.pop %v1245
      %v1278 = vtanh.pop %v1174
      %v1279 = vtanh.pop %v1176
      %v1280 = vtanh.pop %v1248
      %v1281 = vpack.c.bf16 %v1254, %v1251
      %v1282 = vpack.c.bf16 %v1255, %v1252
      %v1283 = vpack.c.bf16 %v1256, %v1253
      %v1284 = vpack.c.bf16 %v1260, %v1257
      %v1285 = vpack.c.bf16 %v1261, %v1258
      %v1286 = vpack.c.bf16 %v1262, %v1259
      %v1287 = vpack.c.bf16 %v1266, %v1263
      %v1288 = vpack.c.bf16 %v1267, %v1264
      %v1289 = vpack.c.bf16 %v1268, %v1265
      %v1290 = vpack.c.bf16 %v1272, %v1269
      %v1291 = vpack.c.bf16 %v1273, %v1270
      %v1292 = vpack.c.bf16 %v1274, %v1271
      %v1293 = vpack.c.bf16 %v1278, %v1275
      %v1294 = vpack.c.bf16 %v1279, %v1276
      %v1295 = vpack.c.bf16 %v1280, %v1277
      %s1296 = scalar_lea.vmem %s2, 80
      %v1297 = vld [vmem:[%s1296] sm:$0xf]
      %v1298 = vld [vmem:[%s1296 + $0x4] sm:$0xf]
      %v1299 = vld [vmem:[%s1296 + $0x8] sm:$0xf]
      %v1300 = vld [vmem:[%s1296 + $0xc] sm:$0xf]
      %v1301 = vld [vmem:[%s1296 + $0x10] sm:$0xf]
      %v1302 = vld [vmem:[%s1296 + $0x14] sm:$0xf]
      %v1303 = vld [vmem:[%s1296 + $0x18] sm:$0xf]
      %v1304 = vld [vmem:[%s1296 + $0x1c] sm:$0xf]
      %v1305 = vld [vmem:[%s1296 + $0x20] sm:$0xf]
      %v1306 = vld [vmem:[%s1296 + $0x24] sm:$0xf]
      %1307 = vset.pattern.permute.xlu0 3
      %1308 = vperm.xlu0 %1307, %v338
      %v1309 = vpop.permute.xlu0 %1308
      %1311 = vset.pattern.permute.xlu0 3
      %1312 = vperm.xlu0 %1311, %v339
      %v1313 = vpop.permute.xlu0 %1312
      %1315 = vset.pattern.permute.xlu0 3
      %1316 = vperm.xlu0 %1315, %v340
      %v1317 = vpop.permute.xlu0 %1316
      %1319 = vset.pattern.permute.xlu0 3
      %1320 = vperm.xlu0 %1319, %v341
      %v1321 = vpop.permute.xlu0 %1320
      %1323 = vset.pattern.permute.xlu0 3
      %1324 = vperm.xlu0 %1323, %v342
      %v1325 = vpop.permute.xlu0 %1324
      %1327 = vset.pattern.permute.xlu0 3
      %1328 = vperm.xlu0 %1327, %v343
      %v1329 = vpop.permute.xlu0 %1328
      %1331 = vset.pattern.permute.xlu0 3
      %1332 = vperm.xlu0 %1331, %v344
      %v1333 = vpop.permute.xlu0 %1332
      %1335 = vset.pattern.permute.xlu0 3
      %1336 = vperm.xlu0 %1335, %v345
      %v1337 = vpop.permute.xlu0 %1336
      %1339 = vset.pattern.permute.xlu0 3
      %1340 = vperm.xlu0 %1339, %v346
      %v1341 = vpop.permute.xlu0 %1340
      %1343 = vset.pattern.permute.xlu0 3
      %1344 = vperm.xlu0 %1343, %v347
      %v1345 = vpop.permute.xlu0 %1344
      %v1357 = vunpack.c.l.b16 %v1297
      %v1358 = vunpack.c.l.b16 %v1298
      %v1359 = vunpack.c.l.b16 %v1299
      %v1360 = vunpack.c.l.b16 %v1300
      %v1361 = vunpack.c.l.b16 %v1301
      %v1362 = vunpack.c.l.b16 %v1302
      %v1363 = vunpack.c.l.b16 %v1303
      %v1364 = vunpack.c.l.b16 %v1304
      %v1365 = vunpack.c.l.b16 %v1305
      %v1366 = vunpack.c.l.b16 %v1306
      %v1367 = vpack.c.b16 %v1358, %v1357
      %v1368 = vpack.c.b16 %v1360, %v1359
      %v1369 = vpack.c.b16 %v1362, %v1361
      %v1370 = vpack.c.b16 %v1364, %v1363
      %v1371 = vpack.c.b16 %v1366, %v1365
      %v1373 = vsel %vm787, %v1367, 0
      %v1376 = vsel %vm787, %v1368, 0
      %v1379 = vsel %vm787, %v1369, 0
      %v1382 = vsel %vm787, %v1370, 0
      %v1385 = vsel %vm787, %v1371, 0
      %1387 = vmatprep.subr.bf16.mxu0 %v1282
      %1388 = vmatpush1.bf16.msra.mxu0 %v1281
      %1389 = vmatprep.subr.bf16.mxu0 %v1285
      %1390 = vmatpush1.bf16.msra.mxu0 %v1284
      %1391 = vmatprep.subr.bf16.mxu0 %v1288
      %1392 = vmatpush1.bf16.msra.mxu0 %v1287
      %1393 = vmatprep.subr.bf16.mxu0 %v1291
      %1394 = vmatpush1.bf16.msra.mxu0 %v1290
      %1395 = vmatprep.subr.bf16.mxu0 %v1294
      %1396 = vmatpush1.bf16.msra.mxu0 %v1293
      %1397 = vmatprep.subr.bf16.mxu0 0
      %1398 = vmatpush1.bf16.msra.mxu0 0
      %1399 = vmatprep.subr.bf16.mxu0 0
      %1400 = vmatpush1.bf16.msra.mxu0 0
      %1401 = vmatprep.subr.bf16.mxu0 0
      %1402 = vmatpush1.bf16.msra.mxu0 0
      %1403 = vmatprep.subr.bf16.mxu0 0
      %1404 = vmatpush1.bf16.msra.mxu0 0
      %1405 = vmatprep.subr.bf16.mxu0 0
      %1406 = vmatpush1.bf16.msra.mxu0 0
      %1407 = vmatprep.subr.bf16.mxu0 0
      %1408 = vmatpush1.bf16.msra.mxu0 0
      %1409 = vmatprep.subr.bf16.mxu0 0
      %1410 = vmatpush1.bf16.msra.mxu0 0
      %1411 = vmatprep.subr.bf16.mxu0 0
      %1412 = vmatpush1.bf16.msra.mxu0 0
      %1413 = vmatprep.subr.bf16.mxu0 0
      %1414 = vmatpush1.bf16.msra.mxu0 0
      %1415 = vmatprep.subr.bf16.mxu0 0
      %1416 = vmatpush1.bf16.msra.mxu0 0
      %1417 = vmatprep.subr.bf16.mxu0 0
      %1418 = vmatpush1.bf16.msra.mxu0 0
      %1419 = vmatprep.mubr.bf16.mxu0 0
      %1420 = vmatmul.mubr.bf16.gmra.mrb[0].mxu0 %v1373
      %v1421 = vpop.f32.mrb[0].mxu0
      %v1422 = vadd.f32 %v1309, %v1421
      %v1423 = vpop.f32.mrb[0].mxu0
      %v1424 = vadd.f32 %v1309, %v1423
      %v1425 = vpop.f32.mrb[0].mxu0
      %v1426 = vadd.f32 %v1313, %v1425
      %v1427 = vpop.f32.mrb[0].mxu0
      %v1428 = vadd.f32 %v1313, %v1427
      %1429 = vmatprep.mubr.bf16.mxu0 0
      %1430 = vmatmul.mubr.bf16.gmra.mrb[0].mxu0 %v1376
      %v1431 = vpop.f32.mrb[0].mxu0
      %v1432 = vadd.f32 %v1317, %v1431
      %v1433 = vpop.f32.mrb[0].mxu0
      %v1434 = vadd.f32 %v1317, %v1433
      %v1435 = vpop.f32.mrb[0].mxu0
      %v1436 = vadd.f32 %v1321, %v1435
      %v1437 = vpop.f32.mrb[0].mxu0
      %v1438 = vadd.f32 %v1321, %v1437
      %1439 = vmatprep.mubr.bf16.mxu0 0
      %1440 = vmatmul.mubr.bf16.gmra.mrb[0].mxu0 %v1379
      %v1441 = vpop.f32.mrb[0].mxu0
      %v1442 = vadd.f32 %v1325, %v1441
      %v1443 = vpop.f32.mrb[0].mxu0
      %v1444 = vadd.f32 %v1325, %v1443
      %v1445 = vpop.f32.mrb[0].mxu0
      %v1446 = vadd.f32 %v1329, %v1445
      %v1447 = vpop.f32.mrb[0].mxu0
      %v1448 = vadd.f32 %v1329, %v1447
      %1449 = vmatprep.mubr.bf16.mxu0 0
      %1450 = vmatmul.mubr.bf16.gmra.mrb[0].mxu0 %v1382
      %v1451 = vpop.f32.mrb[0].mxu0
      %v1452 = vadd.f32 %v1333, %v1451
      %v1453 = vpop.f32.mrb[0].mxu0
      %v1454 = vadd.f32 %v1333, %v1453
      %v1455 = vpop.f32.mrb[0].mxu0
      %v1456 = vadd.f32 %v1337, %v1455
      %v1457 = vpop.f32.mrb[0].mxu0
      %v1458 = vadd.f32 %v1337, %v1457
      %1459 = vmatprep.mubr.bf16.mxu0 0
      %1460 = vmatmul.mubr.bf16.gmra.mrb[0].mxu0 %v1385
      %v1461 = vpop.f32.mrb[0].mxu0
      %v1462 = vadd.f32 %v1341, %v1461
      %v1463 = vpop.f32.mrb[0].mxu0
      %v1464 = vadd.f32 %v1341, %v1463
      %v1465 = vpop.f32.mrb[0].mxu0
      %v1466 = vadd.f32 %v1345, %v1465
      %v1467 = vpop.f32.mrb[0].mxu0
      %v1468 = vadd.f32 %v1345, %v1467
      %1469 = vdwg.mxu0
      %1470 = vmatprep.subr.bf16.mxu0 0
      %1471 = vmatpush1.bf16.msra.mxu0 %v1283
      %1472 = vmatprep.subr.bf16.mxu0 0
      %1473 = vmatpush1.bf16.msra.mxu0 %v1286
      %1474 = vmatprep.subr.bf16.mxu0 0
      %1475 = vmatpush1.bf16.msra.mxu0 %v1289
      %1476 = vmatprep.subr.bf16.mxu0 0
      %1477 = vmatpush1.bf16.msra.mxu0 %v1292
      %1478 = vmatprep.subr.bf16.mxu0 0
      %1479 = vmatpush1.bf16.msra.mxu0 %v1295
      %1480 = vmatprep.subr.bf16.mxu0 0
      %1481 = vmatpush1.bf16.msra.mxu0 0
      %1482 = vmatprep.subr.bf16.mxu0 0
      %1483 = vmatpush1.bf16.msra.mxu0 0
      %1484 = vmatprep.subr.bf16.mxu0 0
      %1485 = vmatpush1.bf16.msra.mxu0 0
      %1486 = vmatprep.subr.bf16.mxu0 0
      %1487 = vmatpush1.bf16.msra.mxu0 0
      %1488 = vmatprep.subr.bf16.mxu0 0
      %1489 = vmatpush1.bf16.msra.mxu0 0
      %1490 = vmatprep.subr.bf16.mxu0 0
      %1491 = vmatpush1.bf16.msra.mxu0 0
      %1492 = vmatprep.subr.bf16.mxu0 0
      %1493 = vmatpush1.bf16.msra.mxu0 0
      %1494 = vmatprep.subr.bf16.mxu0 0
      %1495 = vmatpush1.bf16.msra.mxu0 0
      %1496 = vmatprep.subr.bf16.mxu0 0
      %1497 = vmatpush1.bf16.msra.mxu0 0
      %1498 = vmatprep.subr.bf16.mxu0 0
      %1499 = vmatpush1.bf16.msra.mxu0 0
      %1500 = vmatprep.subr.bf16.mxu0 0
      %1501 = vmatpush1.bf16.msra.mxu0 0
      %1502 = vmatprep.mubr.bf16.mxu0 0
      %1503 = vmatmul.mubr.bf16.gmra.mrb[0].mxu0 %v1373
      %v1504 = vpop.f32.mrb[0].mxu0
      %v1505 = vadd.f32 %v1309, %v1504
      %v1506 = vpop.f32.mrb[0].mxu0
      %v1507 = vpop.f32.mrb[0].mxu0
      %v1508 = vadd.f32 %v1313, %v1507
      %v1509 = vpop.f32.mrb[0].mxu0
      %1510 = vmatprep.mubr.bf16.mxu0 0
      %1511 = vmatmul.mubr.bf16.gmra.mrb[0].mxu0 %v1376
      %v1512 = vpop.f32.mrb[0].mxu0
      %v1513 = vadd.f32 %v1317, %v1512
      %v1514 = vpop.f32.mrb[0].mxu0
      %v1515 = vpop.f32.mrb[0].mxu0
      %v1516 = vadd.f32 %v1321, %v1515
      %v1517 = vpop.f32.mrb[0].mxu0
      %1518 = vmatprep.mubr.bf16.mxu0 0
      %1519 = vmatmul.mubr.bf16.gmra.mrb[0].mxu0 %v1379
      %v1520 = vpop.f32.mrb[0].mxu0
      %v1521 = vadd.f32 %v1325, %v1520
      %v1522 = vpop.f32.mrb[0].mxu0
      %v1523 = vpop.f32.mrb[0].mxu0
      %v1524 = vadd.f32 %v1329, %v1523
      %v1525 = vpop.f32.mrb[0].mxu0
      %1526 = vmatprep.mubr.bf16.mxu0 0
      %1527 = vmatmul.mubr.bf16.gmra.mrb[0].mxu0 %v1382
      %v1528 = vpop.f32.mrb[0].mxu0
      %v1529 = vadd.f32 %v1333, %v1528
      %v1530 = vpop.f32.mrb[0].mxu0
      %v1531 = vpop.f32.mrb[0].mxu0
      %v1532 = vadd.f32 %v1337, %v1531
      %v1533 = vpop.f32.mrb[0].mxu0
      %1534 = vmatprep.mubr.bf16.mxu0 0
      %1535 = vmatmul.mubr.bf16.gmra.mrb[0].mxu0 %v1385
      %v1536 = vpop.f32.mrb[0].mxu0
      %v1537 = vadd.f32 %v1341, %v1536
      %v1538 = vpop.f32.mrb[0].mxu0
      %v1539 = vpop.f32.mrb[0].mxu0
      %v1540 = vadd.f32 %v1345, %v1539
      %v1541 = vpop.f32.mrb[0].mxu0
      %1542 = vdwg.mxu0
      %v1543 = vtanh.pop %v1422
      %v1544 = vtanh.pop %v1424
      %v1545 = vtanh.pop %v1505
      %v1546 = vtanh.pop %v1426
      %v1547 = vtanh.pop %v1428
      %v1548 = vtanh.pop %v1508
      %v1549 = vtanh.pop %v1432
      %v1550 = vtanh.pop %v1434
      %v1551 = vtanh.pop %v1513
      %v1552 = vtanh.pop %v1436
      %v1553 = vtanh.pop %v1438
      %v1554 = vtanh.pop %v1516
      %v1555 = vtanh.pop %v1442
      %v1556 = vtanh.pop %v1444
      %v1557 = vtanh.pop %v1521
      %v1558 = vtanh.pop %v1446
      %v1559 = vtanh.pop %v1448
      %v1560 = vtanh.pop %v1524
      %v1561 = vtanh.pop %v1452
      %v1562 = vtanh.pop %v1454
      %v1563 = vtanh.pop %v1529
      %v1564 = vtanh.pop %v1456
      %v1565 = vtanh.pop %v1458
      %v1566 = vtanh.pop %v1532
      %v1567 = vtanh.pop %v1462
      %v1568 = vtanh.pop %v1464
      %v1569 = vtanh.pop %v1537
      %v1570 = vtanh.pop %v1466
      %v1571 = vtanh.pop %v1468
      %v1572 = vtanh.pop %v1540
      %v1573 = vpack.c.bf16 %v1546, %v1543
      %v1574 = vpack.c.bf16 %v1547, %v1544
      %v1575 = vpack.c.bf16 %v1548, %v1545
      %v1576 = vpack.c.bf16 %v1552, %v1549
      %v1577 = vpack.c.bf16 %v1553, %v1550
      %v1578 = vpack.c.bf16 %v1554, %v1551
      %v1579 = vpack.c.bf16 %v1558, %v1555
      %v1580 = vpack.c.bf16 %v1559, %v1556
      %v1581 = vpack.c.bf16 %v1560, %v1557
      %v1582 = vpack.c.bf16 %v1564, %v1561
      %v1583 = vpack.c.bf16 %v1565, %v1562
      %v1584 = vpack.c.bf16 %v1566, %v1563
      %v1585 = vpack.c.bf16 %v1570, %v1567
      %v1586 = vpack.c.bf16 %v1571, %v1568
      %v1587 = vpack.c.bf16 %v1572, %v1569
      %s1588 = scalar_lea.vmem %s2, 120
      %v1589 = vld [vmem:[%s1588] sm:$0xf]
      %v1590 = vld [vmem:[%s1588 + $0x4] sm:$0xf]
      %v1591 = vld [vmem:[%s1588 + $0x8] sm:$0xf]
      %v1592 = vld [vmem:[%s1588 + $0xc] sm:$0xf]
      %v1593 = vld [vmem:[%s1588 + $0x10] sm:$0xf]
      %v1594 = vld [vmem:[%s1588 + $0x14] sm:$0xf]
      %v1595 = vld [vmem:[%s1588 + $0x18] sm:$0xf]
      %v1596 = vld [vmem:[%s1588 + $0x1c] sm:$0xf]
      %v1597 = vld [vmem:[%s1588 + $0x20] sm:$0xf]
      %v1598 = vld [vmem:[%s1588 + $0x24] sm:$0xf]
      %1599 = vset.pattern.permute.xlu0 4
      %1600 = vperm.xlu0 %1599, %v338
      %v1601 = vpop.permute.xlu0 %1600
      %1603 = vset.pattern.permute.xlu0 4
      %1604 = vperm.xlu0 %1603, %v339
      %v1605 = vpop.permute.xlu0 %1604
      %1607 = vset.pattern.permute.xlu0 4
      %1608 = vperm.xlu0 %1607, %v340
      %v1609 = vpop.permute.xlu0 %1608
      %1611 = vset.pattern.permute.xlu0 4
      %1612 = vperm.xlu0 %1611, %v341
      %v1613 = vpop.permute.xlu0 %1612
      %1615 = vset.pattern.permute.xlu0 4
      %1616 = vperm.xlu0 %1615, %v342
      %v1617 = vpop.permute.xlu0 %1616
      %1619 = vset.pattern.permute.xlu0 4
      %1620 = vperm.xlu0 %1619, %v343
      %v1621 = vpop.permute.xlu0 %1620
      %1623 = vset.pattern.permute.xlu0 4
      %1624 = vperm.xlu0 %1623, %v344
      %v1625 = vpop.permute.xlu0 %1624
      %1627 = vset.pattern.permute.xlu0 4
      %1628 = vperm.xlu0 %1627, %v345
      %v1629 = vpop.permute.xlu0 %1628
      %1631 = vset.pattern.permute.xlu0 4
      %1632 = vperm.xlu0 %1631, %v346
      %v1633 = vpop.permute.xlu0 %1632
      %1635 = vset.pattern.permute.xlu0 4
      %1636 = vperm.xlu0 %1635, %v347
      %v1637 = vpop.permute.xlu0 %1636
      %v1649 = vunpack.c.l.b16 %v1589
      %v1650 = vunpack.c.l.b16 %v1590
      %v1651 = vunpack.c.l.b16 %v1591
      %v1652 = vunpack.c.l.b16 %v1592
      %v1653 = vunpack.c.l.b16 %v1593
      %v1654 = vunpack.c.l.b16 %v1594
      %v1655 = vunpack.c.l.b16 %v1595
      %v1656 = vunpack.c.l.b16 %v1596
      %v1657 = vunpack.c.l.b16 %v1597
      %v1658 = vunpack.c.l.b16 %v1598
      %v1659 = vpack.c.b16 %v1650, %v1649
      %v1660 = vpack.c.b16 %v1652, %v1651
      %v1661 = vpack.c.b16 %v1654, %v1653
      %v1662 = vpack.c.b16 %v1656, %v1655
      %v1663 = vpack.c.b16 %v1658, %v1657
      %v1665 = vsel %vm787, %v1659, 0
      %v1668 = vsel %vm787, %v1660, 0
      %v1671 = vsel %vm787, %v1661, 0
      %v1674 = vsel %vm787, %v1662, 0
      %v1677 = vsel %vm787, %v1663, 0
      %1679 = vmatprep.subr.bf16.mxu0 %v1574
      %1680 = vmatpush1.bf16.msra.mxu0 %v1573
      %1681 = vmatprep.subr.bf16.mxu0 %v1577
      %1682 = vmatpush1.bf16.msra.mxu0 %v1576
      %1683 = vmatprep.subr.bf16.mxu0 %v1580
      %1684 = vmatpush1.bf16.msra.mxu0 %v1579
      %1685 = vmatprep.subr.bf16.mxu0 %v1583
      %1686 = vmatpush1.bf16.msra.mxu0 %v1582
      %1687 = vmatprep.subr.bf16.mxu0 %v1586
      %1688 = vmatpush1.bf16.msra.mxu0 %v1585
      %1689 = vmatprep.subr.bf16.mxu0 0
      %1690 = vmatpush1.bf16.msra.mxu0 0
      %1691 = vmatprep.subr.bf16.mxu0 0
      %1692 = vmatpush1.bf16.msra.mxu0 0
      %1693 = vmatprep.subr.bf16.mxu0 0
      %1694 = vmatpush1.bf16.msra.mxu0 0
      %1695 = vmatprep.subr.bf16.mxu0 0
      %1696 = vmatpush1.bf16.msra.mxu0 0
      %1697 = vmatprep.subr.bf16.mxu0 0
      %1698 = vmatpush1.bf16.msra.mxu0 0
      %1699 = vmatprep.subr.bf16.mxu0 0
      %1700 = vmatpush1.bf16.msra.mxu0 0
      %1701 = vmatprep.subr.bf16.mxu0 0
      %1702 = vmatpush1.bf16.msra.mxu0 0
      %1703 = vmatprep.subr.bf16.mxu0 0
      %1704 = vmatpush1.bf16.msra.mxu0 0
      %1705 = vmatprep.subr.bf16.mxu0 0
      %1706 = vmatpush1.bf16.msra.mxu0 0
      %1707 = vmatprep.subr.bf16.mxu0 0
      %1708 = vmatpush1.bf16.msra.mxu0 0
      %1709 = vmatprep.subr.bf16.mxu0 0
      %1710 = vmatpush1.bf16.msra.mxu0 0
      %1711 = vmatprep.mubr.bf16.mxu0 0
      %1712 = vmatmul.mubr.bf16.gmra.mrb[0].mxu0 %v1665
      %v1713 = vpop.f32.mrb[0].mxu0
      %v1714 = vadd.f32 %v1601, %v1713
      %v1715 = vpop.f32.mrb[0].mxu0
      %v1716 = vadd.f32 %v1601, %v1715
      %v1717 = vpop.f32.mrb[0].mxu0
      %v1718 = vadd.f32 %v1605, %v1717
      %v1719 = vpop.f32.mrb[0].mxu0
      %v1720 = vadd.f32 %v1605, %v1719
      %1721 = vmatprep.mubr.bf16.mxu0 0
      %1722 = vmatmul.mubr.bf16.gmra.mrb[0].mxu0 %v1668
      %v1723 = vpop.f32.mrb[0].mxu0
      %v1724 = vadd.f32 %v1609, %v1723
      %v1725 = vpop.f32.mrb[0].mxu0
      %v1726 = vadd.f32 %v1609, %v1725
      %v1727 = vpop.f32.mrb[0].mxu0
      %v1728 = vadd.f32 %v1613, %v1727
      %v1729 = vpop.f32.mrb[0].mxu0
      %v1730 = vadd.f32 %v1613, %v1729
      %1731 = vmatprep.mubr.bf16.mxu0 0
      %1732 = vmatmul.mubr.bf16.gmra.mrb[0].mxu0 %v1671
      %v1733 = vpop.f32.mrb[0].mxu0
      %v1734 = vadd.f32 %v1617, %v1733
      %v1735 = vpop.f32.mrb[0].mxu0
      %v1736 = vadd.f32 %v1617, %v1735
      %v1737 = vpop.f32.mrb[0].mxu0
      %v1738 = vadd.f32 %v1621, %v1737
      %v1739 = vpop.f32.mrb[0].mxu0
      %v1740 = vadd.f32 %v1621, %v1739
      %1741 = vmatprep.mubr.bf16.mxu0 0
      %1742 = vmatmul.mubr.bf16.gmra.mrb[0].mxu0 %v1674
      %v1743 = vpop.f32.mrb[0].mxu0
      %v1744 = vadd.f32 %v1625, %v1743
      %v1745 = vpop.f32.mrb[0].mxu0
      %v1746 = vadd.f32 %v1625, %v1745
      %v1747 = vpop.f32.mrb[0].mxu0
      %v1748 = vadd.f32 %v1629, %v1747
      %v1749 = vpop.f32.mrb[0].mxu0
      %v1750 = vadd.f32 %v1629, %v1749
      %1751 = vmatprep.mubr.bf16.mxu0 0
      %1752 = vmatmul.mubr.bf16.gmra.mrb[0].mxu0 %v1677
      %v1753 = vpop.f32.mrb[0].mxu0
      %v1754 = vadd.f32 %v1633, %v1753
      %v1755 = vpop.f32.mrb[0].mxu0
      %v1756 = vadd.f32 %v1633, %v1755
      %v1757 = vpop.f32.mrb[0].mxu0
      %v1758 = vadd.f32 %v1637, %v1757
      %v1759 = vpop.f32.mrb[0].mxu0
      %v1760 = vadd.f32 %v1637, %v1759
      %1761 = vdwg.mxu0
      %1762 = vmatprep.subr.bf16.mxu0 0
      %1763 = vmatpush1.bf16.msra.mxu0 %v1575
      %1764 = vmatprep.subr.bf16.mxu0 0
      %1765 = vmatpush1.bf16.msra.mxu0 %v1578
      %1766 = vmatprep.subr.bf16.mxu0 0
      %1767 = vmatpush1.bf16.msra.mxu0 %v1581
      %1768 = vmatprep.subr.bf16.mxu0 0
      %1769 = vmatpush1.bf16.msra.mxu0 %v1584
      %1770 = vmatprep.subr.bf16.mxu0 0
      %1771 = vmatpush1.bf16.msra.mxu0 %v1587
      %1772 = vmatprep.subr.bf16.mxu0 0
      %1773 = vmatpush1.bf16.msra.mxu0 0
      %1774 = vmatprep.subr.bf16.mxu0 0
      %1775 = vmatpush1.bf16.msra.mxu0 0
      %1776 = vmatprep.subr.bf16.mxu0 0
      %1777 = vmatpush1.bf16.msra.mxu0 0
      %1778 = vmatprep.subr.bf16.mxu0 0
      %1779 = vmatpush1.bf16.msra.mxu0 0
      %1780 = vmatprep.subr.bf16.mxu0 0
      %1781 = vmatpush1.bf16.msra.mxu0 0
      %1782 = vmatprep.subr.bf16.mxu0 0
      %1783 = vmatpush1.bf16.msra.mxu0 0
      %1784 = vmatprep.subr.bf16.mxu0 0
      %1785 = vmatpush1.bf16.msra.mxu0 0
      %1786 = vmatprep.subr.bf16.mxu0 0
      %1787 = vmatpush1.bf16.msra.mxu0 0
      %1788 = vmatprep.subr.bf16.mxu0 0
      %1789 = vmatpush1.bf16.msra.mxu0 0
      %1790 = vmatprep.subr.bf16.mxu0 0
      %1791 = vmatpush1.bf16.msra.mxu0 0
      %1792 = vmatprep.subr.bf16.mxu0 0
      %1793 = vmatpush1.bf16.msra.mxu0 0
      %1794 = vmatprep.mubr.bf16.mxu0 0
      %1795 = vmatmul.mubr.bf16.gmra.mrb[0].mxu0 %v1665
      %v1796 = vpop.f32.mrb[0].mxu0
      %v1797 = vadd.f32 %v1601, %v1796
      %v1798 = vpop.f32.mrb[0].mxu0
      %v1799 = vpop.f32.mrb[0].mxu0
      %v1800 = vadd.f32 %v1605, %v1799
      %v1801 = vpop.f32.mrb[0].mxu0
      %1802 = vmatprep.mubr.bf16.mxu0 0
      %1803 = vmatmul.mubr.bf16.gmra.mrb[0].mxu0 %v1668
      %v1804 = vpop.f32.mrb[0].mxu0
      %v1805 = vadd.f32 %v1609, %v1804
      %v1806 = vpop.f32.mrb[0].mxu0
      %v1807 = vpop.f32.mrb[0].mxu0
      %v1808 = vadd.f32 %v1613, %v1807
      %v1809 = vpop.f32.mrb[0].mxu0
      %1810 = vmatprep.mubr.bf16.mxu0 0
      %1811 = vmatmul.mubr.bf16.gmra.mrb[0].mxu0 %v1671
      %v1812 = vpop.f32.mrb[0].mxu0
      %v1813 = vadd.f32 %v1617, %v1812
      %v1814 = vpop.f32.mrb[0].mxu0
      %v1815 = vpop.f32.mrb[0].mxu0
      %v1816 = vadd.f32 %v1621, %v1815
      %v1817 = vpop.f32.mrb[0].mxu0
      %1818 = vmatprep.mubr.bf16.mxu0 0
      %1819 = vmatmul.mubr.bf16.gmra.mrb[0].mxu0 %v1674
      %v1820 = vpop.f32.mrb[0].mxu0
      %v1821 = vadd.f32 %v1625, %v1820
      %v1822 = vpop.f32.mrb[0].mxu0
      %v1823 = vpop.f32.mrb[0].mxu0
      %v1824 = vadd.f32 %v1629, %v1823
      %v1825 = vpop.f32.mrb[0].mxu0
      %1826 = vmatprep.mubr.bf16.mxu0 0
      %1827 = vmatmul.mubr.bf16.gmra.mrb[0].mxu0 %v1677
      %v1828 = vpop.f32.mrb[0].mxu0
      %v1829 = vadd.f32 %v1633, %v1828
      %v1830 = vpop.f32.mrb[0].mxu0
      %v1831 = vpop.f32.mrb[0].mxu0
      %v1832 = vadd.f32 %v1637, %v1831
      %v1833 = vpop.f32.mrb[0].mxu0
      %1834 = vdwg.mxu0
      %v1835 = vtanh.pop %v1714
      %v1836 = vtanh.pop %v1716
      %v1837 = vtanh.pop %v1797
      %v1838 = vtanh.pop %v1718
      %v1839 = vtanh.pop %v1720
      %v1840 = vtanh.pop %v1800
      %v1841 = vtanh.pop %v1724
      %v1842 = vtanh.pop %v1726
      %v1843 = vtanh.pop %v1805
      %v1844 = vtanh.pop %v1728
      %v1845 = vtanh.pop %v1730
      %v1846 = vtanh.pop %v1808
      %v1847 = vtanh.pop %v1734
      %v1848 = vtanh.pop %v1736
      %v1849 = vtanh.pop %v1813
      %v1850 = vtanh.pop %v1738
      %v1851 = vtanh.pop %v1740
      %v1852 = vtanh.pop %v1816
      %v1853 = vtanh.pop %v1744
      %v1854 = vtanh.pop %v1746
      %v1855 = vtanh.pop %v1821
      %v1856 = vtanh.pop %v1748
      %v1857 = vtanh.pop %v1750
      %v1858 = vtanh.pop %v1824
      %v1859 = vtanh.pop %v1754
      %v1860 = vtanh.pop %v1756
      %v1861 = vtanh.pop %v1829
      %v1862 = vtanh.pop %v1758
      %v1863 = vtanh.pop %v1760
      %v1864 = vtanh.pop %v1832
      %v1865 = vpack.c.bf16 %v1838, %v1835
      %v1866 = vpack.c.bf16 %v1839, %v1836
      %v1867 = vpack.c.bf16 %v1840, %v1837
      %v1868 = vpack.c.bf16 %v1844, %v1841
      %v1869 = vpack.c.bf16 %v1845, %v1842
      %v1870 = vpack.c.bf16 %v1846, %v1843
      %v1871 = vpack.c.bf16 %v1850, %v1847
      %v1872 = vpack.c.bf16 %v1851, %v1848
      %v1873 = vpack.c.bf16 %v1852, %v1849
      %v1874 = vpack.c.bf16 %v1856, %v1853
      %v1875 = vpack.c.bf16 %v1857, %v1854
      %v1876 = vpack.c.bf16 %v1858, %v1855
      %v1877 = vpack.c.bf16 %v1862, %v1859
      %v1878 = vpack.c.bf16 %v1863, %v1860
      %v1879 = vpack.c.bf16 %v1864, %v1861
      %s1880 = scalar_lea.vmem %s2, 160
      %v1881 = vld [vmem:[%s1880] sm:$0xf]
      %v1882 = vld [vmem:[%s1880 + $0x4] sm:$0xf]
      %v1883 = vld [vmem:[%s1880 + $0x8] sm:$0xf]
      %v1884 = vld [vmem:[%s1880 + $0xc] sm:$0xf]
      %v1885 = vld [vmem:[%s1880 + $0x10] sm:$0xf]
      %v1886 = vld [vmem:[%s1880 + $0x14] sm:$0xf]
      %v1887 = vld [vmem:[%s1880 + $0x18] sm:$0xf]
      %v1888 = vld [vmem:[%s1880 + $0x1c] sm:$0xf]
      %v1889 = vld [vmem:[%s1880 + $0x20] sm:$0xf]
      %v1890 = vld [vmem:[%s1880 + $0x24] sm:$0xf]
      %1891 = vset.pattern.permute.xlu0 5
      %1892 = vperm.xlu0 %1891, %v338
      %v1893 = vpop.permute.xlu0 %1892
      %1895 = vset.pattern.permute.xlu0 5
      %1896 = vperm.xlu0 %1895, %v339
      %v1897 = vpop.permute.xlu0 %1896
      %1899 = vset.pattern.permute.xlu0 5
      %1900 = vperm.xlu0 %1899, %v340
      %v1901 = vpop.permute.xlu0 %1900
      %1903 = vset.pattern.permute.xlu0 5
      %1904 = vperm.xlu0 %1903, %v341
      %v1905 = vpop.permute.xlu0 %1904
      %1907 = vset.pattern.permute.xlu0 5
      %1908 = vperm.xlu0 %1907, %v342
      %v1909 = vpop.permute.xlu0 %1908
      %1911 = vset.pattern.permute.xlu0 5
      %1912 = vperm.xlu0 %1911, %v343
      %v1913 = vpop.permute.xlu0 %1912
      %1915 = vset.pattern.permute.xlu0 5
      %1916 = vperm.xlu0 %1915, %v344
      %v1917 = vpop.permute.xlu0 %1916
      %1919 = vset.pattern.permute.xlu0 5
      %1920 = vperm.xlu0 %1919, %v345
      %v1921 = vpop.permute.xlu0 %1920
      %1923 = vset.pattern.permute.xlu0 5
      %1924 = vperm.xlu0 %1923, %v346
      %v1925 = vpop.permute.xlu0 %1924
      %1927 = vset.pattern.permute.xlu0 5
      %1928 = vperm.xlu0 %1927, %v347
      %v1929 = vpop.permute.xlu0 %1928
      %v1941 = vunpack.c.l.b16 %v1881
      %v1942 = vunpack.c.l.b16 %v1882
      %v1943 = vunpack.c.l.b16 %v1883
      %v1944 = vunpack.c.l.b16 %v1884
      %v1945 = vunpack.c.l.b16 %v1885
      %v1946 = vunpack.c.l.b16 %v1886
      %v1947 = vunpack.c.l.b16 %v1887
      %v1948 = vunpack.c.l.b16 %v1888
      %v1949 = vunpack.c.l.b16 %v1889
      %v1950 = vunpack.c.l.b16 %v1890
      %v1951 = vpack.c.b16 %v1942, %v1941
      %v1952 = vpack.c.b16 %v1944, %v1943
      %v1953 = vpack.c.b16 %v1946, %v1945
      %v1954 = vpack.c.b16 %v1948, %v1947
      %v1955 = vpack.c.b16 %v1950, %v1949
      %v1957 = vsel %vm787, %v1951, 0
      %v1960 = vsel %vm787, %v1952, 0
      %v1963 = vsel %vm787, %v1953, 0
      %v1966 = vsel %vm787, %v1954, 0
      %v1969 = vsel %vm787, %v1955, 0
      %1971 = vmatprep.subr.bf16.mxu0 %v1866
      %1972 = vmatpush1.bf16.msra.mxu0 %v1865
      %1973 = vmatprep.subr.bf16.mxu0 %v1869
      %1974 = vmatpush1.bf16.msra.mxu0 %v1868
      %1975 = vmatprep.subr.bf16.mxu0 %v1872
      %1976 = vmatpush1.bf16.msra.mxu0 %v1871
      %1977 = vmatprep.subr.bf16.mxu0 %v1875
      %1978 = vmatpush1.bf16.msra.mxu0 %v1874
      %1979 = vmatprep.subr.bf16.mxu0 %v1878
      %1980 = vmatpush1.bf16.msra.mxu0 %v1877
      %1981 = vmatprep.subr.bf16.mxu0 0
      %1982 = vmatpush1.bf16.msra.mxu0 0
      %1983 = vmatprep.subr.bf16.mxu0 0
      %1984 = vmatpush1.bf16.msra.mxu0 0
      %1985 = vmatprep.subr.bf16.mxu0 0
      %1986 = vmatpush1.bf16.msra.mxu0 0
      %1987 = vmatprep.subr.bf16.mxu0 0
      %1988 = vmatpush1.bf16.msra.mxu0 0
      %1989 = vmatprep.subr.bf16.mxu0 0
      %1990 = vmatpush1.bf16.msra.mxu0 0
      %1991 = vmatprep.subr.bf16.mxu0 0
      %1992 = vmatpush1.bf16.msra.mxu0 0
      %1993 = vmatprep.subr.bf16.mxu0 0
      %1994 = vmatpush1.bf16.msra.mxu0 0
      %1995 = vmatprep.subr.bf16.mxu0 0
      %1996 = vmatpush1.bf16.msra.mxu0 0
      %1997 = vmatprep.subr.bf16.mxu0 0
      %1998 = vmatpush1.bf16.msra.mxu0 0
      %1999 = vmatprep.subr.bf16.mxu0 0
      %2000 = vmatpush1.bf16.msra.mxu0 0
      %2001 = vmatprep.subr.bf16.mxu0 0
      %2002 = vmatpush1.bf16.msra.mxu0 0
      %2003 = vmatprep.mubr.bf16.mxu0 0
      %2004 = vmatmul.mubr.bf16.gmra.mrb[0].mxu0 %v1957
      %v2005 = vpop.f32.mrb[0].mxu0
      %v2006 = vadd.f32 %v1893, %v2005
      %v2007 = vpop.f32.mrb[0].mxu0
      %v2008 = vadd.f32 %v1893, %v2007
      %v2009 = vpop.f32.mrb[0].mxu0
      %v2010 = vadd.f32 %v1897, %v2009
      %v2011 = vpop.f32.mrb[0].mxu0
      %v2012 = vadd.f32 %v1897, %v2011
      %2013 = vmatprep.mubr.bf16.mxu0 0
      %2014 = vmatmul.mubr.bf16.gmra.mrb[0].mxu0 %v1960
      %v2015 = vpop.f32.mrb[0].mxu0
      %v2016 = vadd.f32 %v1901, %v2015
      %v2017 = vpop.f32.mrb[0].mxu0
      %v2018 = vadd.f32 %v1901, %v2017
      %v2019 = vpop.f32.mrb[0].mxu0
      %v2020 = vadd.f32 %v1905, %v2019
      %v2021 = vpop.f32.mrb[0].mxu0
      %v2022 = vadd.f32 %v1905, %v2021
      %2023 = vmatprep.mubr.bf16.mxu0 0
      %2024 = vmatmul.mubr.bf16.gmra.mrb[0].mxu0 %v1963
      %v2025 = vpop.f32.mrb[0].mxu0
      %v2026 = vadd.f32 %v1909, %v2025
      %v2027 = vpop.f32.mrb[0].mxu0
      %v2028 = vadd.f32 %v1909, %v2027
      %v2029 = vpop.f32.mrb[0].mxu0
      %v2030 = vadd.f32 %v1913, %v2029
      %v2031 = vpop.f32.mrb[0].mxu0
      %v2032 = vadd.f32 %v1913, %v2031
      %2033 = vmatprep.mubr.bf16.mxu0 0
      %2034 = vmatmul.mubr.bf16.gmra.mrb[0].mxu0 %v1966
      %v2035 = vpop.f32.mrb[0].mxu0
      %v2036 = vadd.f32 %v1917, %v2035
      %v2037 = vpop.f32.mrb[0].mxu0
      %v2038 = vadd.f32 %v1917, %v2037
      %v2039 = vpop.f32.mrb[0].mxu0
      %v2040 = vadd.f32 %v1921, %v2039
      %v2041 = vpop.f32.mrb[0].mxu0
      %v2042 = vadd.f32 %v1921, %v2041
      %2043 = vmatprep.mubr.bf16.mxu0 0
      %2044 = vmatmul.mubr.bf16.gmra.mrb[0].mxu0 %v1969
      %v2045 = vpop.f32.mrb[0].mxu0
      %v2046 = vadd.f32 %v1925, %v2045
      %v2047 = vpop.f32.mrb[0].mxu0
      %v2048 = vadd.f32 %v1925, %v2047
      %v2049 = vpop.f32.mrb[0].mxu0
      %v2050 = vadd.f32 %v1929, %v2049
      %v2051 = vpop.f32.mrb[0].mxu0
      %v2052 = vadd.f32 %v1929, %v2051
      %2053 = vdwg.mxu0
      %2054 = vmatprep.subr.bf16.mxu0 0
      %2055 = vmatpush1.bf16.msra.mxu0 %v1867
      %2056 = vmatprep.subr.bf16.mxu0 0
      %2057 = vmatpush1.bf16.msra.mxu0 %v1870
      %2058 = vmatprep.subr.bf16.mxu0 0
      %2059 = vmatpush1.bf16.msra.mxu0 %v1873
      %2060 = vmatprep.subr.bf16.mxu0 0
      %2061 = vmatpush1.bf16.msra.mxu0 %v1876
      %2062 = vmatprep.subr.bf16.mxu0 0
      %2063 = vmatpush1.bf16.msra.mxu0 %v1879
      %2064 = vmatprep.subr.bf16.mxu0 0
      %2065 = vmatpush1.bf16.msra.mxu0 0
      %2066 = vmatprep.subr.bf16.mxu0 0
      %2067 = vmatpush1.bf16.msra.mxu0 0
      %2068 = vmatprep.subr.bf16.mxu0 0
      %2069 = vmatpush1.bf16.msra.mxu0 0
      %2070 = vmatprep.subr.bf16.mxu0 0
      %2071 = vmatpush1.bf16.msra.mxu0 0
      %2072 = vmatprep.subr.bf16.mxu0 0
      %2073 = vmatpush1.bf16.msra.mxu0 0
      %2074 = vmatprep.subr.bf16.mxu0 0
      %2075 = vmatpush1.bf16.msra.mxu0 0
      %2076 = vmatprep.subr.bf16.mxu0 0
      %2077 = vmatpush1.bf16.msra.mxu0 0
      %2078 = vmatprep.subr.bf16.mxu0 0
      %2079 = vmatpush1.bf16.msra.mxu0 0
      %2080 = vmatprep.subr.bf16.mxu0 0
      %2081 = vmatpush1.bf16.msra.mxu0 0
      %2082 = vmatprep.subr.bf16.mxu0 0
      %2083 = vmatpush1.bf16.msra.mxu0 0
      %2084 = vmatprep.subr.bf16.mxu0 0
      %2085 = vmatpush1.bf16.msra.mxu0 0
      %2086 = vmatprep.mubr.bf16.mxu0 0
      %2087 = vmatmul.mubr.bf16.gmra.mrb[0].mxu0 %v1957
      %v2088 = vpop.f32.mrb[0].mxu0
      %v2089 = vadd.f32 %v1893, %v2088
      %v2090 = vpop.f32.mrb[0].mxu0
      %v2091 = vpop.f32.mrb[0].mxu0
      %v2092 = vadd.f32 %v1897, %v2091
      %v2093 = vpop.f32.mrb[0].mxu0
      %2094 = vmatprep.mubr.bf16.mxu0 0
      %2095 = vmatmul.mubr.bf16.gmra.mrb[0].mxu0 %v1960
      %v2096 = vpop.f32.mrb[0].mxu0
      %v2097 = vadd.f32 %v1901, %v2096
      %v2098 = vpop.f32.mrb[0].mxu0
      %v2099 = vpop.f32.mrb[0].mxu0
      %v2100 = vadd.f32 %v1905, %v2099
      %v2101 = vpop.f32.mrb[0].mxu0
      %2102 = vmatprep.mubr.bf16.mxu0 0
      %2103 = vmatmul.mubr.bf16.gmra.mrb[0].mxu0 %v1963
      %v2104 = vpop.f32.mrb[0].mxu0
      %v2105 = vadd.f32 %v1909, %v2104
      %v2106 = vpop.f32.mrb[0].mxu0
      %v2107 = vpop.f32.mrb[0].mxu0
      %v2108 = vadd.f32 %v1913, %v2107
      %v2109 = vpop.f32.mrb[0].mxu0
      %2110 = vmatprep.mubr.bf16.mxu0 0
      %2111 = vmatmul.mubr.bf16.gmra.mrb[0].mxu0 %v1966
      %v2112 = vpop.f32.mrb[0].mxu0
      %v2113 = vadd.f32 %v1917, %v2112
      %v2114 = vpop.f32.mrb[0].mxu0
      %v2115 = vpop.f32.mrb[0].mxu0
      %v2116 = vadd.f32 %v1921, %v2115
      %v2117 = vpop.f32.mrb[0].mxu0
      %2118 = vmatprep.mubr.bf16.mxu0 0
      %2119 = vmatmul.mubr.bf16.gmra.mrb[0].mxu0 %v1969
      %v2120 = vpop.f32.mrb[0].mxu0
      %v2121 = vadd.f32 %v1925, %v2120
      %v2122 = vpop.f32.mrb[0].mxu0
      %v2123 = vpop.f32.mrb[0].mxu0
      %v2124 = vadd.f32 %v1929, %v2123
      %v2125 = vpop.f32.mrb[0].mxu0
      %2126 = vdwg.mxu0
      %v2127 = vtanh.pop %v2006
      %v2128 = vtanh.pop %v2008
      %v2129 = vtanh.pop %v2089
      %v2130 = vtanh.pop %v2010
      %v2131 = vtanh.pop %v2012
      %v2132 = vtanh.pop %v2092
      %v2133 = vtanh.pop %v2016
      %v2134 = vtanh.pop %v2018
      %v2135 = vtanh.pop %v2097
      %v2136 = vtanh.pop %v2020
      %v2137 = vtanh.pop %v2022
      %v2138 = vtanh.pop %v2100
      %v2139 = vtanh.pop %v2026
      %v2140 = vtanh.pop %v2028
      %v2141 = vtanh.pop %v2105
      %v2142 = vtanh.pop %v2030
      %v2143 = vtanh.pop %v2032
      %v2144 = vtanh.pop %v2108
      %v2145 = vtanh.pop %v2036
      %v2146 = vtanh.pop %v2038
      %v2147 = vtanh.pop %v2113
      %v2148 = vtanh.pop %v2040
      %v2149 = vtanh.pop %v2042
      %v2150 = vtanh.pop %v2116
      %v2151 = vtanh.pop %v2046
      %v2152 = vtanh.pop %v2048
      %v2153 = vtanh.pop %v2121
      %v2154 = vtanh.pop %v2050
      %v2155 = vtanh.pop %v2052
      %v2156 = vtanh.pop %v2124
      %v2157 = vpack.c.bf16 %v2130, %v2127
      %v2158 = vpack.c.bf16 %v2131, %v2128
      %v2159 = vpack.c.bf16 %v2132, %v2129
      %v2160 = vpack.c.bf16 %v2136, %v2133
      %v2161 = vpack.c.bf16 %v2137, %v2134
      %v2162 = vpack.c.bf16 %v2138, %v2135
      %v2163 = vpack.c.bf16 %v2142, %v2139
      %v2164 = vpack.c.bf16 %v2143, %v2140
      %v2165 = vpack.c.bf16 %v2144, %v2141
      %v2166 = vpack.c.bf16 %v2148, %v2145
      %v2167 = vpack.c.bf16 %v2149, %v2146
      %v2168 = vpack.c.bf16 %v2150, %v2147
      %v2169 = vpack.c.bf16 %v2154, %v2151
      %v2170 = vpack.c.bf16 %v2155, %v2152
      %v2171 = vpack.c.bf16 %v2156, %v2153
      %v2172 = vld [vmem:[%s4] sm:$0x1]
      %v2173 = vld [vmem:[#allocation2] sm:$0x1]
      %2175 = vset.pattern.permute.xlu0 0
      %2176 = vperm.xlu0 %2175, %v2173
      %v2177 = vpop.permute.xlu0 %2176
      %v2179 = vlaneseq
      %v2180 = vshrl.u32 %v2179, 7
      %v2181 = vsub.s32 0, %v2180
      %v2182 = vrot.slane %v2177, %v2181
      %v2184 = vsel %vm787, %v2172, 0
      %2186 = vmatprep.subr.bf16.mxu0 %v2158
      %2187 = vmatpush1.bf16.msra.mxu0 %v2157
      %2188 = vmatprep.subr.bf16.mxu0 %v2161
      %2189 = vmatpush1.bf16.msra.mxu0 %v2160
      %2190 = vmatprep.subr.bf16.mxu0 %v2164
      %2191 = vmatpush1.bf16.msra.mxu0 %v2163
      %2192 = vmatprep.subr.bf16.mxu0 %v2167
      %2193 = vmatpush1.bf16.msra.mxu0 %v2166
      %2194 = vmatprep.subr.bf16.mxu0 %v2170
      %2195 = vmatpush1.bf16.msra.mxu0 %v2169
      %2196 = vmatprep.subr.bf16.mxu0 0
      %2197 = vmatpush1.bf16.msra.mxu0 0
      %2198 = vmatprep.subr.bf16.mxu0 0
      %2199 = vmatpush1.bf16.msra.mxu0 0
      %2200 = vmatprep.subr.bf16.mxu0 0
      %2201 = vmatpush1.bf16.msra.mxu0 0
      %2202 = vmatprep.subr.bf16.mxu0 0
      %2203 = vmatpush1.bf16.msra.mxu0 0
      %2204 = vmatprep.subr.bf16.mxu0 0
      %2205 = vmatpush1.bf16.msra.mxu0 0
      %2206 = vmatprep.subr.bf16.mxu0 0
      %2207 = vmatpush1.bf16.msra.mxu0 0
      %2208 = vmatprep.subr.bf16.mxu0 0
      %2209 = vmatpush1.bf16.msra.mxu0 0
      %2210 = vmatprep.subr.bf16.mxu0 0
      %2211 = vmatpush1.bf16.msra.mxu0 0
      %2212 = vmatprep.subr.bf16.mxu0 0
      %2213 = vmatpush1.bf16.msra.mxu0 0
      %2214 = vmatprep.subr.bf16.mxu0 0
      %2215 = vmatpush1.bf16.msra.mxu0 0
      %2216 = vmatprep.subr.bf16.mxu0 0
      %2217 = vmatpush1.bf16.msra.mxu0 0
      %2218 = vmatprep.mubr.bf16.mxu0 0
      %2219 = vmatmul.mubr.bf16.gmra.mrb[0].mxu0 %v2184
      %v2220 = vpop.f32.mrb[0].mxu0
      %v2221 = vadd.f32 %v2182, %v2220
      %v2222 = vpop.f32.mrb[0].mxu0
      %v2223 = vadd.f32 %v2182, %v2222
      %v2224 = vpop.f32.mrb[0].mxu0
      %v2225 = vpop.f32.mrb[0].mxu0
      %2226 = vdwg.mxu0
      %2227 = vmatprep.subr.bf16.mxu0 0
      %2228 = vmatpush1.bf16.msra.mxu0 %v2159
      %2229 = vmatprep.subr.bf16.mxu0 0
      %2230 = vmatpush1.bf16.msra.mxu0 %v2162
      %2231 = vmatprep.subr.bf16.mxu0 0
      %2232 = vmatpush1.bf16.msra.mxu0 %v2165
      %2233 = vmatprep.subr.bf16.mxu0 0
      %2234 = vmatpush1.bf16.msra.mxu0 %v2168
      %2235 = vmatprep.subr.bf16.mxu0 0
      %2236 = vmatpush1.bf16.msra.mxu0 %v2171
      %2237 = vmatprep.subr.bf16.mxu0 0
      %2238 = vmatpush1.bf16.msra.mxu0 0
      %2239 = vmatprep.subr.bf16.mxu0 0
      %2240 = vmatpush1.bf16.msra.mxu0 0
      %2241 = vmatprep.subr.bf16.mxu0 0
      %2242 = vmatpush1.bf16.msra.mxu0 0
      %2243 = vmatprep.subr.bf16.mxu0 0
      %2244 = vmatpush1.bf16.msra.mxu0 0
      %2245 = vmatprep.subr.bf16.mxu0 0
      %2246 = vmatpush1.bf16.msra.mxu0 0
      %2247 = vmatprep.subr.bf16.mxu0 0
      %2248 = vmatpush1.bf16.msra.mxu0 0
      %2249 = vmatprep.subr.bf16.mxu0 0
      %2250 = vmatpush1.bf16.msra.mxu0 0
      %2251 = vmatprep.subr.bf16.mxu0 0
      %2252 = vmatpush1.bf16.msra.mxu0 0
      %2253 = vmatprep.subr.bf16.mxu0 0
      %2254 = vmatpush1.bf16.msra.mxu0 0
      %2255 = vmatprep.subr.bf16.mxu0 0
      %2256 = vmatpush1.bf16.msra.mxu0 0
      %2257 = vmatprep.subr.bf16.mxu0 0
      %2258 = vmatpush1.bf16.msra.mxu0 0
      %2259 = vmatprep.mubr.bf16.mxu0 0
      %2260 = vmatmul.mubr.bf16.gmra.mrb[0].mxu0 %v2184
      %v2261 = vpop.f32.mrb[0].mxu0
      %v2262 = vadd.f32 %v2182, %v2261
      %v2263 = vpop.f32.mrb[0].mxu0
      %v2264 = vpop.f32.mrb[0].mxu0
      %v2265 = vpop.f32.mrb[0].mxu0
      %2266 = vdwg.mxu0
      %v2270 = vcombine.low %v2221, %v2223
      %v2272 = vunpack.c.l.s4 1966171168
      %v2273 = vunpack.c.0.s8 %v2272
      %v2274 = vlaneseq
      %v2275 = vshrl.u32 %v2274, 7
      %v2276 = vsub.s32 %v2273, %v2275
      %v2277 = vrot.slane %v2270, %v2276
      %v2279 = vunpack.c.l.s4 1966171168
      %v2280 = vunpack.c.0.s8 %v2279
      %v2281 = vlaneseq
      %v2282 = vshrl.u32 %v2281, 7
      %v2283 = vsub.s32 %v2280, %v2282
      %v2284 = vrot.slane %v2262, %v2283
      %v2285 = vcombine.low %v2277, %v2284
      %v2287 = vunpack.c.l.s4 1966171168
      %v2288 = vunpack.c.0.s8 %v2287
      %v2289 = vlaneseq
      %v2290 = vshrl.u32 %v2289, 7
      %v2291 = vsub.s32 %v2288, %v2290
      %v2292 = vrot.slane %v2285, %v2291
      %v2294 = vlaneseq
      %vm2295 = vcmp.ge.s32.totalorder %v2294, 0
      %vm2296 = vcmp.lt.s32.totalorder %v2294, 384
      %vm2297 = vmand %vm2295, %vm2296
      %2298 = vst.msk [vmem:[%s253] sm:$0x7] %vm2297, %v2292
      %s2299 = smul.u32 3, %s19
      %p2300 = scmp.lt.s32.totalorder %s2299, 5
      %s2301 = scalar_select %p2300, %s2299, 5
      %s2302 = scalar_lea.vmem %s6, %s2301
      // Predicated region
      $region45: #{dnn1_forward.1} parent=43 // pred_check
        %p2303 = pneg %p168
      $region46: #{dnn1_forward.1} parent=43 // pred_check_branch
        %2305 = sbr.rel (%p2303) target = $region48
      $region47: #{dnn1_forward.1} parent=43 // pred_region
        %s2306 = smul.u32 3, %s19
      $region48: #{dnn1_forward.1} parent=43 // pred_fallthru
        _
    $region44: #{dnn1_forward.1} parent=5 // pred_fallthru
      _
    %p2307 = scmp.le.s32.totalorder 2, %s14
    // Predicated region
    $region49: #{dnn1_forward.1} parent=5 // pred_check
      %p2308 = pneg %p2307
    $region50: #{dnn1_forward.1} parent=5 // pred_check_branch
      %2310 = sbr.rel (%p2308) target = $region52
    $region51: #{dnn1_forward.1} parent=5 // pred_region
      %s2311 = ssub.s32 %s14, 2
      // Predicated region
      $region53: #{dnn1_forward.1} parent=51 // pred_check
        %p2312 = pneg %p174
      $region54: #{dnn1_forward.1} parent=51 // pred_check_branch
        %2314 = sbr.rel (%p2312) target = $region56
      $region55: #{dnn1_forward.1} parent=51 // pred_region
        %s2315 = smul.u32 3, %s20
        %p2316 = scmp.lt.s32.totalorder %s2315, 5
        %s2317 = scalar_select %p2316, %s2315, 5
        %s2318 = scalar_lea.vmem %s6, %s2317
      $region56: #{dnn1_forward.1} parent=51 // pred_fallthru
        _
    $region52: #{dnn1_forward.1} parent=5 // pred_fallthru
      _
  $region6: #{dnn1_forward.1} parent=0 // loop_footer
    %s18 = sadd.s32 1, %s14
  $region7: #{dnn1_forward.1} parent=0 // loop_footer_branch
    %13 = sbr.rel target = $region3
  $region8: #{dnn1_forward.1} parent=0 // loop_exit
    _

</llo_original>
